<compile_context>
chip_gen: v6e
topology: v6e:2x2x1
jax: 0.10.0
libtpu: 0.0.40
codegen_flags: <defaults>
</compile_context>

<pallas_src>
import functools

import jax
import jax.numpy as jnp
from jax.experimental import pallas as pl
from jax.experimental.pallas import tpu as pltpu


def ntm_kernel(x_ref,
               w_enc_ref, b_enc_ref,      # fused [fc11 | fcs]   : (V, 2H), (1, 2H)
               w12_ref, b12_ref,          # fc12                 : (H, H),  (1, H)
               w_heads_ref, b_heads_ref,  # fused [fc21 | fc22]  : (H, 2K), (1, 2K)
               wg1_ref, bg1_ref, wg2_ref, bg2_ref,
               wg3_ref, bg3_ref, wg4_ref, bg4_ref,
               wd_ref, bd_ref,            # fcd1                 : (K, V),  (1, V)
               zg_out, ml_out, recon_out,
               *, hidden_dim, topic_num):
    H, K = hidden_dim, topic_num

    def dot(a, w_ref):
        # bf16 x bf16 on the MXU, f32 accumulation.
        return jnp.dot(a.astype(jnp.bfloat16), w_ref[...],
                       preferred_element_type=jnp.float32)

    x = x_ref[...]

    # ---- encode ----
    # Single MXU pass over x computes [fc11(x) | fcs(x)] (fcs bias half is zero).
    enc = dot(x, w_enc_ref) + b_enc_ref[...]
    h = jnp.maximum(enc[:, :H], 0.0)                              # relu(fc11(x))
    skip = enc[:, H:]                                             # fcs(x)
    h = jnp.maximum(dot(h, w12_ref) + b12_ref[...], 0.0)          # relu(fc12)
    e1 = h + skip

    # Fused mu/logvar heads: one (H, 2K) matmul, 2K = 128 lanes.
    ml = dot(e1, w_heads_ref) + b_heads_ref[...]                  # [mu | logvar]
    mu = ml[:, :K]

    # ---- reparameterize (eval mode) ----
    z = mu

    # ---- generate ----
    g = jnp.tanh(dot(z, wg1_ref) + bg1_ref[...])
    g = jnp.tanh(dot(g, wg2_ref) + bg2_ref[...])
    g = jnp.tanh(dot(g, wg3_ref) + bg3_ref[...])
    g = jnp.tanh(dot(g, wg4_ref) + bg4_ref[...])
    g = g + z

    # ---- decode: softmax(fcd1(g), dim=1) ----
    logits = dot(g, wd_ref) + bd_ref[...]
    m = jnp.max(logits, axis=-1, keepdims=True)
    p = jnp.exp(logits - m)
    recon = p * pl.reciprocal(jnp.sum(p, axis=-1, keepdims=True), approx=True)

    # Lane-dense packed stores: [z | g] and [mu | logvar] are 128-wide slabs.
    zg_out[...] = jnp.concatenate([z, g], axis=-1)
    ml_out[...] = ml
    recon_out[...] = recon


def pack_params(p):
    """Fuse + cast torch-style (in, out) weights for the kernel."""
    H = p["w12"].shape[0]
    f = {}
    f["w_enc"] = jnp.concatenate([p["w11"], p["ws"]], axis=1).astype(jnp.bfloat16)
    f["b_enc"] = jnp.concatenate([p["b11"], jnp.zeros((1, H), jnp.float32)], axis=1)
    f["w12"] = p["w12"].astype(jnp.bfloat16)
    f["b12"] = p["b12"]
    f["w_heads"] = jnp.concatenate([p["w21"], p["w22"]], axis=1).astype(jnp.bfloat16)
    f["b_heads"] = jnp.concatenate([p["b21"], p["b22"]], axis=1)
    for i in (1, 2, 3, 4):
        f[f"wg{i}"] = p[f"wg{i}"].astype(jnp.bfloat16)
        f[f"bg{i}"] = p[f"bg{i}"]
    f["wd"] = p["wd"].astype(jnp.bfloat16)
    f["bd"] = p["bd"]
    return f


def _round_up(n, m):
    return ((n + m - 1) // m) * m


def ntm_forward(x, fused, *, tile_b=256):
    """x: (B, input_dim) float32.  fused: output of pack_params()."""
    B, V = x.shape
    H = fused["w12"].shape[0]
    K = fused["wg1"].shape[0]

    # Batch tile: as large as useful (>=256 fills the v6e/v7x MXU rows) but
    # never bigger than the (sublane-rounded) batch itself.
    tb = min(tile_b, _round_up(B, 8))
    Bp = _round_up(B, tb)
    if Bp != B:
        x = jnp.pad(x, ((0, Bp - B), (0, 0)))
    grid = (Bp // tb,)

    weight_args = (fused["w_enc"], fused["b_enc"], fused["w12"], fused["b12"],
                   fused["w_heads"], fused["b_heads"],
                   fused["wg1"], fused["bg1"], fused["wg2"], fused["bg2"],
                   fused["wg3"], fused["bg3"], fused["wg4"], fused["bg4"],
                   fused["wd"], fused["bd"])

    # x / outputs tiled along batch; weights resident (same block every step).
    x_spec = pl.BlockSpec((tb, V), lambda i: (i, 0))
    in_specs = [x_spec] + [pl.BlockSpec(w.shape, lambda i: (0, 0)) for w in weight_args]
    out_specs = (pl.BlockSpec((tb, 2 * K), lambda i: (i, 0)),
                 pl.BlockSpec((tb, 2 * K), lambda i: (i, 0)),
                 pl.BlockSpec((tb, V), lambda i: (i, 0)))
    out_shape = (jax.ShapeDtypeStruct((Bp, 2 * K), jnp.float32),   # [z | g]
                 jax.ShapeDtypeStruct((Bp, 2 * K), jnp.float32),   # [mu | logvar]
                 jax.ShapeDtypeStruct((Bp, V), jnp.float32))       # recon

    flops = 2 * Bp * (V * 2 * H + H * H + H * 2 * K + 4 * K * K + K * V)
    weight_bytes = sum(int(w.size) * int(w.dtype.itemsize) for w in weight_args)
    bytes_accessed = int(x.size) * 4 + weight_bytes + Bp * (4 * K + V) * 4
    cost = pl.CostEstimate(flops=int(flops),
                           transcendentals=int(Bp * (4 * K + V)),
                           bytes_accessed=int(bytes_accessed))

    kernel = functools.partial(ntm_kernel, hidden_dim=H, topic_num=K)

    zg, ml, recon = pl.pallas_call(
        kernel,
        grid=grid,
        in_specs=in_specs,
        out_specs=out_specs,
        out_shape=out_shape,
        compiler_params=pltpu.CompilerParams(
            dimension_semantics=("parallel",),
            vmem_limit_bytes=32 << 20),
        cost_estimate=cost,
    )(x, *weight_args)

    z = zg[:B, :K]
    g = zg[:B, K:]
    mu = ml[:B, :K]
    logvar = ml[:B, K:]
    return z, g, recon[:B], mu, logvar


def init_params(key, input_dim, hidden_dim, topic_num):
    """Deterministic init mimicking nn.Linear default U(-1/sqrt(fan_in), +1/sqrt(fan_in)).
    Weights stored as (in_features, out_features); biases as (1, out_features)."""
    def linear(k, fan_in, fan_out, bias=True):
        kw, kb = jax.random.split(k)
        bound = 1.0 / (fan_in ** 0.5)
        w = jax.random.uniform(kw, (fan_in, fan_out), jnp.float32, -bound, bound)
        if bias:
            b = jax.random.uniform(kb, (1, fan_out), jnp.float32, -bound, bound)
            return w, b
        return w, None

    keys = jax.random.split(key, 10)
    p = {}
    p["w11"], p["b11"] = linear(keys[0], input_dim, hidden_dim)
    p["w12"], p["b12"] = linear(keys[1], hidden_dim, hidden_dim)
    p["w21"], p["b21"] = linear(keys[2], hidden_dim, topic_num)
    p["w22"], p["b22"] = linear(keys[3], hidden_dim, topic_num)
    p["ws"], _         = linear(keys[4], input_dim, hidden_dim, bias=False)
    p["wg1"], p["bg1"] = linear(keys[5], topic_num, topic_num)
    p["wg2"], p["bg2"] = linear(keys[6], topic_num, topic_num)
    p["wg3"], p["bg3"] = linear(keys[7], topic_num, topic_num)
    p["wg4"], p["bg4"] = linear(keys[8], topic_num, topic_num)
    p["wd"], p["bd"]   = linear(keys[9], topic_num, input_dim)
    return p


if __name__ == "__main__":
    # Small synthetic config: bow_vocab_size=256, hidden_dim=128, topic_num=64, batch=8.
    INPUT_DIM, HIDDEN_DIM, TOPIC_NUM, BATCH = 256, 128, 64, 8

    key = jax.random.PRNGKey(0)
    k_x, k_p = jax.random.split(key)

    # Bag-of-words style non-negative input (as a topic model would receive).
    x = jax.random.uniform(k_x, (BATCH, INPUT_DIM), jnp.float32, 0.0, 1.0)
    params = init_params(k_p, INPUT_DIM, HIDDEN_DIM, TOPIC_NUM)
    fused = pack_params(params)

    z, g, recon, mu, logvar = ntm_forward(x, fused)
    jax.block_until_ready((z, g, recon, mu, logvar))

    # Pure-JAX reference of the same math (same bf16 weights / bf16 matmul
    # inputs with f32 accumulation, exact softmax division).
    def ref(x, p):
        def dot(a, w):
            return jnp.dot(a.astype(jnp.bfloat16), w.astype(jnp.bfloat16),
                           preferred_element_type=jnp.float32)
        e1 = jnp.maximum(dot(x, p["w11"]) + p["b11"], 0.0)
        e1 = jnp.maximum(dot(e1, p["w12"]) + p["b12"], 0.0)
        e1 = e1 + dot(x, p["ws"])
        mu = dot(e1, p["w21"]) + p["b21"]
        logvar = dot(e1, p["w22"]) + p["b22"]
        zz = mu
        gg = jnp.tanh(dot(zz, p["wg1"]) + p["bg1"])
        gg = jnp.tanh(dot(gg, p["wg2"]) + p["bg2"])
        gg = jnp.tanh(dot(gg, p["wg3"]) + p["bg3"])
        gg = jnp.tanh(dot(gg, p["wg4"]) + p["bg4"])
        gg = gg + zz
        rec = jax.nn.softmax(dot(gg, p["wd"]) + p["bd"], axis=1)
        return zz, gg, rec, mu, logvar

    refs = ref(x, params)
    for a, b in zip((z, g, recon, mu, logvar), refs):
        assert jnp.allclose(a, b, atol=2e-3, rtol=2e-3), float(jnp.max(jnp.abs(a - b)))

    print("KERNEL_OK")
</pallas_src>

<mosaic_0001>
module attributes {stable_mosaic.version = 11 : i64} {
  func.func @ntm_kernel(%arg0: i32, %arg1: memref<8x256xf32, #tpu.memory_space<vmem>>, %arg2: memref<256x256xbf16, #tpu.memory_space<vmem>>, %arg3: memref<1x256xf32, #tpu.memory_space<vmem>>, %arg4: memref<128x128xbf16, #tpu.memory_space<vmem>>, %arg5: memref<1x128xf32, #tpu.memory_space<vmem>>, %arg6: memref<128x128xbf16, #tpu.memory_space<vmem>>, %arg7: memref<1x128xf32, #tpu.memory_space<vmem>>, %arg8: memref<64x64xbf16, #tpu.memory_space<vmem>>, %arg9: memref<1x64xf32, #tpu.memory_space<vmem>>, %arg10: memref<64x64xbf16, #tpu.memory_space<vmem>>, %arg11: memref<1x64xf32, #tpu.memory_space<vmem>>, %arg12: memref<64x64xbf16, #tpu.memory_space<vmem>>, %arg13: memref<1x64xf32, #tpu.memory_space<vmem>>, %arg14: memref<64x64xbf16, #tpu.memory_space<vmem>>, %arg15: memref<1x64xf32, #tpu.memory_space<vmem>>, %arg16: memref<64x256xbf16, #tpu.memory_space<vmem>>, %arg17: memref<1x256xf32, #tpu.memory_space<vmem>>, %arg18: memref<8x128xf32, #tpu.memory_space<vmem>>, %arg19: memref<8x128xf32, #tpu.memory_space<vmem>>, %arg20: memref<8x256xf32, #tpu.memory_space<vmem>>) attributes {dimension_semantics = [#tpu.dimension_semantics<parallel>], iteration_bounds = array<i64: 1>, scalar_prefetch = 0 : i64, scratch_operands = 0 : i64, tpu.core_type = #tpu.core_type<tc>, window_params = [{transform_indices = @transform_0, window_bounds = array<i64: 8, 256>}, {pipeline_mode = #tpu.pipeline_mode<synchronous>, transform_indices = @transform_1, window_bounds = array<i64: 256, 256>}, {pipeline_mode = #tpu.pipeline_mode<synchronous>, transform_indices = @transform_2, window_bounds = array<i64: 1, 256>}, {pipeline_mode = #tpu.pipeline_mode<synchronous>, transform_indices = @transform_3, window_bounds = array<i64: 128, 128>}, {pipeline_mode = #tpu.pipeline_mode<synchronous>, transform_indices = @transform_4, window_bounds = array<i64: 1, 128>}, {pipeline_mode = #tpu.pipeline_mode<synchronous>, transform_indices = @transform_5, window_bounds = array<i64: 128, 128>}, {pipeline_mode = #tpu.pipeline_mode<synchronous>, transform_indices = @transform_6, window_bounds = array<i64: 1, 128>}, {pipeline_mode = #tpu.pipeline_mode<synchronous>, transform_indices = @transform_7, window_bounds = array<i64: 64, 64>}, {pipeline_mode = #tpu.pipeline_mode<synchronous>, transform_indices = @transform_8, window_bounds = array<i64: 1, 64>}, {pipeline_mode = #tpu.pipeline_mode<synchronous>, transform_indices = @transform_9, window_bounds = array<i64: 64, 64>}, {pipeline_mode = #tpu.pipeline_mode<synchronous>, transform_indices = @transform_10, window_bounds = array<i64: 1, 64>}, {pipeline_mode = #tpu.pipeline_mode<synchronous>, transform_indices = @transform_11, window_bounds = array<i64: 64, 64>}, {pipeline_mode = #tpu.pipeline_mode<synchronous>, transform_indices = @transform_12, window_bounds = array<i64: 1, 64>}, {pipeline_mode = #tpu.pipeline_mode<synchronous>, transform_indices = @transform_13, window_bounds = array<i64: 64, 64>}, {pipeline_mode = #tpu.pipeline_mode<synchronous>, transform_indices = @transform_14, window_bounds = array<i64: 1, 64>}, {pipeline_mode = #tpu.pipeline_mode<synchronous>, transform_indices = @transform_15, window_bounds = array<i64: 64, 256>}, {pipeline_mode = #tpu.pipeline_mode<synchronous>, transform_indices = @transform_16, window_bounds = array<i64: 1, 256>}, {transform_indices = @transform_17, window_bounds = array<i64: 8, 128>}, {transform_indices = @transform_18, window_bounds = array<i64: 8, 128>}, {transform_indices = @transform_19, window_bounds = array<i64: 8, 256>}]} {
    %c0 = arith.constant 0 : index
    %c0_0 = arith.constant 0 : index
    %0 = vector.load %arg1[%c0, %c0_0] : memref<8x256xf32, #tpu.memory_space<vmem>>, vector<8x256xf32>
    %1 = arith.truncf %0 : vector<8x256xf32> to vector<8x256xbf16>
    %c0_1 = arith.constant 0 : index
    %c0_2 = arith.constant 0 : index
    %2 = vector.load %arg2[%c0_1, %c0_2] : memref<256x256xbf16, #tpu.memory_space<vmem>>, vector<256x256xbf16>
    %cst = arith.constant dense<0.000000e+00> : vector<8x256xf32>
    %3 = tpu.matmul %1, %2, %cst {dimension_numbers = #tpu.dot_dimension_numbers<[1], [0], [0], [1], [0, 0, 1, 1], [], []>} : vector<8x256xbf16>, vector<256x256xbf16>, vector<8x256xf32> -> vector<8x256xf32>
    %c0_3 = arith.constant 0 : index
    %c0_4 = arith.constant 0 : index
    %4 = vector.load %arg3[%c0_3, %c0_4] : memref<1x256xf32, #tpu.memory_space<vmem>>, vector<1x256xf32>
    %5 = vector.broadcast %4 : vector<1x256xf32> to vector<8x256xf32>
    %6 = arith.addf %3, %5 : vector<8x256xf32>
    %7 = vector.extract_strided_slice %6 {offsets = [0, 0], sizes = [8, 128], strides = [1, 1]} : vector<8x256xf32> to vector<8x128xf32>
    %cst_5 = arith.constant 0.000000e+00 : f32
    %8 = vector.broadcast %cst_5 : f32 to vector<8x128xf32>
    %9 = arith.maximumf %7, %8 : vector<8x128xf32>
    %10 = vector.extract_strided_slice %6 {offsets = [0, 128], sizes = [8, 128], strides = [1, 1]} : vector<8x256xf32> to vector<8x128xf32>
    %11 = arith.truncf %9 : vector<8x128xf32> to vector<8x128xbf16>
    %c0_6 = arith.constant 0 : index
    %c0_7 = arith.constant 0 : index
    %12 = vector.load %arg4[%c0_6, %c0_7] : memref<128x128xbf16, #tpu.memory_space<vmem>>, vector<128x128xbf16>
    %cst_8 = arith.constant dense<0.000000e+00> : vector<8x128xf32>
    %13 = tpu.matmul %11, %12, %cst_8 {dimension_numbers = #tpu.dot_dimension_numbers<[1], [0], [0], [1], [0, 0, 1, 1], [], []>} : vector<8x128xbf16>, vector<128x128xbf16>, vector<8x128xf32> -> vector<8x128xf32>
    %c0_9 = arith.constant 0 : index
    %c0_10 = arith.constant 0 : index
    %14 = vector.load %arg5[%c0_9, %c0_10] : memref<1x128xf32, #tpu.memory_space<vmem>>, vector<1x128xf32>
    %15 = vector.broadcast %14 : vector<1x128xf32> to vector<8x128xf32>
    %16 = arith.addf %13, %15 : vector<8x128xf32>
    %cst_11 = arith.constant 0.000000e+00 : f32
    %17 = vector.broadcast %cst_11 : f32 to vector<8x128xf32>
    %18 = arith.maximumf %16, %17 : vector<8x128xf32>
    %19 = arith.addf %18, %10 : vector<8x128xf32>
    %20 = arith.truncf %19 : vector<8x128xf32> to vector<8x128xbf16>
    %c0_12 = arith.constant 0 : index
    %c0_13 = arith.constant 0 : index
    %21 = vector.load %arg6[%c0_12, %c0_13] : memref<128x128xbf16, #tpu.memory_space<vmem>>, vector<128x128xbf16>
    %cst_14 = arith.constant dense<0.000000e+00> : vector<8x128xf32>
    %22 = tpu.matmul %20, %21, %cst_14 {dimension_numbers = #tpu.dot_dimension_numbers<[1], [0], [0], [1], [0, 0, 1, 1], [], []>} : vector<8x128xbf16>, vector<128x128xbf16>, vector<8x128xf32> -> vector<8x128xf32>
    %c0_15 = arith.constant 0 : index
    %c0_16 = arith.constant 0 : index
    %23 = vector.load %arg7[%c0_15, %c0_16] : memref<1x128xf32, #tpu.memory_space<vmem>>, vector<1x128xf32>
    %24 = vector.broadcast %23 : vector<1x128xf32> to vector<8x128xf32>
    %25 = arith.addf %22, %24 : vector<8x128xf32>
    %26 = vector.extract_strided_slice %25 {offsets = [0, 0], sizes = [8, 64], strides = [1, 1]} : vector<8x128xf32> to vector<8x64xf32>
    %27 = arith.truncf %26 : vector<8x64xf32> to vector<8x64xbf16>
    %c0_17 = arith.constant 0 : index
    %c0_18 = arith.constant 0 : index
    %28 = vector.load %arg8[%c0_17, %c0_18] : memref<64x64xbf16, #tpu.memory_space<vmem>>, vector<64x64xbf16>
    %cst_19 = arith.constant dense<0.000000e+00> : vector<8x64xf32>
    %29 = tpu.matmul %27, %28, %cst_19 {dimension_numbers = #tpu.dot_dimension_numbers<[1], [0], [0], [1], [0, 0, 1, 1], [], []>} : vector<8x64xbf16>, vector<64x64xbf16>, vector<8x64xf32> -> vector<8x64xf32>
    %c0_20 = arith.constant 0 : index
    %c0_21 = arith.constant 0 : index
    %30 = vector.load %arg9[%c0_20, %c0_21] : memref<1x64xf32, #tpu.memory_space<vmem>>, vector<1x64xf32>
    %31 = vector.broadcast %30 : vector<1x64xf32> to vector<8x64xf32>
    %32 = arith.addf %29, %31 : vector<8x64xf32>
    %33 = math.tanh %32 : vector<8x64xf32>
    %34 = arith.truncf %33 : vector<8x64xf32> to vector<8x64xbf16>
    %c0_22 = arith.constant 0 : index
    %c0_23 = arith.constant 0 : index
    %35 = vector.load %arg10[%c0_22, %c0_23] : memref<64x64xbf16, #tpu.memory_space<vmem>>, vector<64x64xbf16>
    %cst_24 = arith.constant dense<0.000000e+00> : vector<8x64xf32>
    %36 = tpu.matmul %34, %35, %cst_24 {dimension_numbers = #tpu.dot_dimension_numbers<[1], [0], [0], [1], [0, 0, 1, 1], [], []>} : vector<8x64xbf16>, vector<64x64xbf16>, vector<8x64xf32> -> vector<8x64xf32>
    %c0_25 = arith.constant 0 : index
    %c0_26 = arith.constant 0 : index
    %37 = vector.load %arg11[%c0_25, %c0_26] : memref<1x64xf32, #tpu.memory_space<vmem>>, vector<1x64xf32>
    %38 = vector.broadcast %37 : vector<1x64xf32> to vector<8x64xf32>
    %39 = arith.addf %36, %38 : vector<8x64xf32>
    %40 = math.tanh %39 : vector<8x64xf32>
    %41 = arith.truncf %40 : vector<8x64xf32> to vector<8x64xbf16>
    %c0_27 = arith.constant 0 : index
    %c0_28 = arith.constant 0 : index
    %42 = vector.load %arg12[%c0_27, %c0_28] : memref<64x64xbf16, #tpu.memory_space<vmem>>, vector<64x64xbf16>
    %cst_29 = arith.constant dense<0.000000e+00> : vector<8x64xf32>
    %43 = tpu.matmul %41, %42, %cst_29 {dimension_numbers = #tpu.dot_dimension_numbers<[1], [0], [0], [1], [0, 0, 1, 1], [], []>} : vector<8x64xbf16>, vector<64x64xbf16>, vector<8x64xf32> -> vector<8x64xf32>
    %c0_30 = arith.constant 0 : index
    %c0_31 = arith.constant 0 : index
    %44 = vector.load %arg13[%c0_30, %c0_31] : memref<1x64xf32, #tpu.memory_space<vmem>>, vector<1x64xf32>
    %45 = vector.broadcast %44 : vector<1x64xf32> to vector<8x64xf32>
    %46 = arith.addf %43, %45 : vector<8x64xf32>
    %47 = math.tanh %46 : vector<8x64xf32>
    %48 = arith.truncf %47 : vector<8x64xf32> to vector<8x64xbf16>
    %c0_32 = arith.constant 0 : index
    %c0_33 = arith.constant 0 : index
    %49 = vector.load %arg14[%c0_32, %c0_33] : memref<64x64xbf16, #tpu.memory_space<vmem>>, vector<64x64xbf16>
    %cst_34 = arith.constant dense<0.000000e+00> : vector<8x64xf32>
    %50 = tpu.matmul %48, %49, %cst_34 {dimension_numbers = #tpu.dot_dimension_numbers<[1], [0], [0], [1], [0, 0, 1, 1], [], []>} : vector<8x64xbf16>, vector<64x64xbf16>, vector<8x64xf32> -> vector<8x64xf32>
    %c0_35 = arith.constant 0 : index
    %c0_36 = arith.constant 0 : index
    %51 = vector.load %arg15[%c0_35, %c0_36] : memref<1x64xf32, #tpu.memory_space<vmem>>, vector<1x64xf32>
    %52 = vector.broadcast %51 : vector<1x64xf32> to vector<8x64xf32>
    %53 = arith.addf %50, %52 : vector<8x64xf32>
    %54 = math.tanh %53 : vector<8x64xf32>
    %55 = arith.addf %54, %26 : vector<8x64xf32>
    %56 = arith.truncf %55 : vector<8x64xf32> to vector<8x64xbf16>
    %c0_37 = arith.constant 0 : index
    %c0_38 = arith.constant 0 : index
    %57 = vector.load %arg16[%c0_37, %c0_38] : memref<64x256xbf16, #tpu.memory_space<vmem>>, vector<64x256xbf16>
    %cst_39 = arith.constant dense<0.000000e+00> : vector<8x256xf32>
    %58 = tpu.matmul %56, %57, %cst_39 {dimension_numbers = #tpu.dot_dimension_numbers<[1], [0], [0], [1], [0, 0, 1, 1], [], []>} : vector<8x64xbf16>, vector<64x256xbf16>, vector<8x256xf32> -> vector<8x256xf32>
    %c0_40 = arith.constant 0 : index
    %c0_41 = arith.constant 0 : index
    %59 = vector.load %arg17[%c0_40, %c0_41] : memref<1x256xf32, #tpu.memory_space<vmem>>, vector<1x256xf32>
    %60 = vector.broadcast %59 : vector<1x256xf32> to vector<8x256xf32>
    %61 = arith.addf %58, %60 : vector<8x256xf32>
    %cst_42 = arith.constant dense<0xFF800000> : vector<8xf32>
    %62 = vector.multi_reduction <maximumf>, %61, %cst_42 [1] : vector<8x256xf32> to vector<8xf32>
    %63 = vector.shape_cast %62 : vector<8xf32> to vector<8x1xf32>
    %64 = vector.broadcast %63 : vector<8x1xf32> to vector<8x256xf32>
    %65 = arith.subf %61, %64 : vector<8x256xf32>
    %66 = math.exp %65 : vector<8x256xf32>
    %cst_43 = arith.constant dense<0.000000e+00> : vector<8xf32>
    %67 = vector.multi_reduction <add>, %66, %cst_43 [1] : vector<8x256xf32> to vector<8xf32>
    %68 = vector.shape_cast %67 : vector<8xf32> to vector<8x1xf32>
    %69 = tpu.reciprocal %68 {approx = true} : vector<8x1xf32> -> vector<8x1xf32>
    %70 = vector.broadcast %69 : vector<8x1xf32> to vector<8x256xf32>
    %71 = arith.mulf %66, %70 : vector<8x256xf32>
    %72 = tpu.concatenate %26, %55 in 1 : vector<8x64xf32>, vector<8x64xf32> -> vector<8x128xf32>
    %c0_44 = arith.constant 0 : index
    %c0_45 = arith.constant 0 : index
    %73 = vector.load %arg18[%c0_44, %c0_45] : memref<8x128xf32, #tpu.memory_space<vmem>>, vector<8x128xf32>
    tpu.vector_store %arg18[%c0_44, %c0_45], %72 {strides = array<i32>} : memref<8x128xf32, #tpu.memory_space<vmem>>, vector<8x128xf32>,
    %c0_46 = arith.constant 0 : index
    %c0_47 = arith.constant 0 : index
    %74 = vector.load %arg19[%c0_46, %c0_47] : memref<8x128xf32, #tpu.memory_space<vmem>>, vector<8x128xf32>
    tpu.vector_store %arg19[%c0_46, %c0_47], %25 {strides = array<i32>} : memref<8x128xf32, #tpu.memory_space<vmem>>, vector<8x128xf32>,
    %c0_48 = arith.constant 0 : index
    %c0_49 = arith.constant 0 : index
    %75 = vector.load %arg20[%c0_48, %c0_49] : memref<8x256xf32, #tpu.memory_space<vmem>>, vector<8x256xf32>
    tpu.vector_store %arg20[%c0_48, %c0_49], %71 {strides = array<i32>} : memref<8x256xf32, #tpu.memory_space<vmem>>, vector<8x256xf32>,
    return
  }
  func.func @transform_0(%arg0: i32) -> (i32, i32) {
    %c0_i32 = arith.constant 0 : i32
    %c0_i32_0 = arith.constant 0 : i32
    return %arg0, %c0_i32 : i32, i32
  }
  func.func @transform_1(%arg0: i32) -> (i32, i32) {
    %c0_i32 = arith.constant 0 : i32
    %c0_i32_0 = arith.constant 0 : i32
    %c0_i32_1 = arith.constant 0 : i32
    return %c0_i32, %c0_i32_0 : i32, i32
  }
  func.func @transform_2(%arg0: i32) -> (i32, i32) {
    %c0_i32 = arith.constant 0 : i32
    %c0_i32_0 = arith.constant 0 : i32
    %c0_i32_1 = arith.constant 0 : i32
    return %c0_i32, %c0_i32_0 : i32, i32
  }
  func.func @transform_3(%arg0: i32) -> (i32, i32) {
    %c0_i32 = arith.constant 0 : i32
    %c0_i32_0 = arith.constant 0 : i32
    %c0_i32_1 = arith.constant 0 : i32
    return %c0_i32, %c0_i32_0 : i32, i32
  }
  func.func @transform_4(%arg0: i32) -> (i32, i32) {
    %c0_i32 = arith.constant 0 : i32
    %c0_i32_0 = arith.constant 0 : i32
    %c0_i32_1 = arith.constant 0 : i32
    return %c0_i32, %c0_i32_0 : i32, i32
  }
  func.func @transform_5(%arg0: i32) -> (i32, i32) {
    %c0_i32 = arith.constant 0 : i32
    %c0_i32_0 = arith.constant 0 : i32
    %c0_i32_1 = arith.constant 0 : i32
    return %c0_i32, %c0_i32_0 : i32, i32
  }
  func.func @transform_6(%arg0: i32) -> (i32, i32) {
    %c0_i32 = arith.constant 0 : i32
    %c0_i32_0 = arith.constant 0 : i32
    %c0_i32_1 = arith.constant 0 : i32
    return %c0_i32, %c0_i32_0 : i32, i32
  }
  func.func @transform_7(%arg0: i32) -> (i32, i32) {
    %c0_i32 = arith.constant 0 : i32
    %c0_i32_0 = arith.constant 0 : i32
    %c0_i32_1 = arith.constant 0 : i32
    return %c0_i32, %c0_i32_0 : i32, i32
  }
  func.func @transform_8(%arg0: i32) -> (i32, i32) {
    %c0_i32 = arith.constant 0 : i32
    %c0_i32_0 = arith.constant 0 : i32
    %c0_i32_1 = arith.constant 0 : i32
    return %c0_i32, %c0_i32_0 : i32, i32
  }
  func.func @transform_9(%arg0: i32) -> (i32, i32) {
    %c0_i32 = arith.constant 0 : i32
    %c0_i32_0 = arith.constant 0 : i32
    %c0_i32_1 = arith.constant 0 : i32
    return %c0_i32, %c0_i32_0 : i32, i32
  }
  func.func @transform_10(%arg0: i32) -> (i32, i32) {
    %c0_i32 = arith.constant 0 : i32
    %c0_i32_0 = arith.constant 0 : i32
    %c0_i32_1 = arith.constant 0 : i32
    return %c0_i32, %c0_i32_0 : i32, i32
  }
  func.func @transform_11(%arg0: i32) -> (i32, i32) {
    %c0_i32 = arith.constant 0 : i32
    %c0_i32_0 = arith.constant 0 : i32
    %c0_i32_1 = arith.constant 0 : i32
    return %c0_i32, %c0_i32_0 : i32, i32
  }
  func.func @transform_12(%arg0: i32) -> (i32, i32) {
    %c0_i32 = arith.constant 0 : i32
    %c0_i32_0 = arith.constant 0 : i32
    %c0_i32_1 = arith.constant 0 : i32
    return %c0_i32, %c0_i32_0 : i32, i32
  }
  func.func @transform_13(%arg0: i32) -> (i32, i32) {
    %c0_i32 = arith.constant 0 : i32
    %c0_i32_0 = arith.constant 0 : i32
    %c0_i32_1 = arith.constant 0 : i32
    return %c0_i32, %c0_i32_0 : i32, i32
  }
  func.func @transform_14(%arg0: i32) -> (i32, i32) {
    %c0_i32 = arith.constant 0 : i32
    %c0_i32_0 = arith.constant 0 : i32
    %c0_i32_1 = arith.constant 0 : i32
    return %c0_i32, %c0_i32_0 : i32, i32
  }
  func.func @transform_15(%arg0: i32) -> (i32, i32) {
    %c0_i32 = arith.constant 0 : i32
    %c0_i32_0 = arith.constant 0 : i32
    %c0_i32_1 = arith.constant 0 : i32
    return %c0_i32, %c0_i32_0 : i32, i32
  }
  func.func @transform_16(%arg0: i32) -> (i32, i32) {
    %c0_i32 = arith.constant 0 : i32
    %c0_i32_0 = arith.constant 0 : i32
    %c0_i32_1 = arith.constant 0 : i32
    return %c0_i32, %c0_i32_0 : i32, i32
  }
  func.func @transform_17(%arg0: i32) -> (i32, i32) {
    %c0_i32 = arith.constant 0 : i32
    %c0_i32_0 = arith.constant 0 : i32
    return %arg0, %c0_i32 : i32, i32
  }
  func.func @transform_18(%arg0: i32) -> (i32, i32) {
    %c0_i32 = arith.constant 0 : i32
    %c0_i32_0 = arith.constant 0 : i32
    return %arg0, %c0_i32 : i32, i32
  }
  func.func @transform_19(%arg0: i32) -> (i32, i32) {
    %c0_i32 = arith.constant 0 : i32
    %c0_i32_0 = arith.constant 0 : i32
    return %arg0, %c0_i32 : i32, i32
  }
}

</mosaic_0001>

<llo_original>
// kernel: tpu_custom_call.1
$region0: #{tpu_custom_call.1}
  #allocation0 [shape = 'u32[]', space=smem, size = 0x4, offset = 0x4, fixed_abs, tag = 'smem constant byte address 0x4 - core index']
  #allocation1 [shape = 'u32[144,128]{1,0:T(1,128)}', space=vmem, size = 0x12000, scoped, tag = 'internal scratch']
  %s0 = inlined_call_operand.hbm [shape: f32[8,256], index: 0, kind: input, shape index: {}]
  %s1 = inlined_call_operand.hbm [shape: bf16[256,256], index: 1, kind: input, shape index: {}]
  %s2 = inlined_call_operand.vmem [shape: f32[1,256], index: 2, kind: input, shape index: {}]
  %s3 = inlined_call_operand.hbm [shape: bf16[128,128], index: 3, kind: input, shape index: {}]
  %s4 = inlined_call_operand.vmem [shape: f32[1,128], index: 4, kind: input, shape index: {}]
  %s5 = inlined_call_operand.hbm [shape: bf16[128,128], index: 5, kind: input, shape index: {}]
  %s6 = inlined_call_operand.vmem [shape: f32[1,128], index: 6, kind: input, shape index: {}]
  %s7 = inlined_call_operand.hbm [shape: bf16[64,64], index: 7, kind: input, shape index: {}]
  %s8 = inlined_call_operand.vmem [shape: f32[1,64], index: 8, kind: input, shape index: {}]
  %s9 = inlined_call_operand.hbm [shape: bf16[64,64], index: 9, kind: input, shape index: {}]
  %s10 = inlined_call_operand.vmem [shape: f32[1,64], index: 10, kind: input, shape index: {}]
  %s11 = inlined_call_operand.hbm [shape: bf16[64,64], index: 11, kind: input, shape index: {}]
  %s12 = inlined_call_operand.vmem [shape: f32[1,64], index: 12, kind: input, shape index: {}]
  %s13 = inlined_call_operand.hbm [shape: bf16[64,64], index: 13, kind: input, shape index: {}]
  %s14 = inlined_call_operand.vmem [shape: f32[1,64], index: 14, kind: input, shape index: {}]
  %s15 = inlined_call_operand.hbm [shape: bf16[64,256], index: 15, kind: input, shape index: {}]
  %s16 = inlined_call_operand.vmem [shape: f32[1,256], index: 16, kind: input, shape index: {}]
  %s17 = inlined_call_operand.hbm [shape: f32[8,128], index: 17, kind: output, shape index: {0}]
  %s18 = inlined_call_operand.hbm [shape: f32[8,128], index: 18, kind: output, shape index: {1}]
  %s19 = inlined_call_operand.hbm [shape: f32[8,256], index: 19, kind: output, shape index: {2}]
  %20 = xla_tuple %s17, %s18, %s19
  %s21 = sld [smem:[#allocation0]]
  $region130: #{tpu_custom_call.1} parent=0
    _
  %s23 = ssub.s32 1, %s21
  %s24 = scalar_select 0, %s23, %s21
  $region1: #{tpu_custom_call.1} parent=0
    #allocation2 [shape = 'u8[8192]{0}', space=vmem, size = 0x2000, scoped, tag = 'input window, operand 0, single buffered']
    #allocation3 [shape = 's32[1]{0}', space=sflag, size = 0x4, scoped, tag = 'scoped memory for tpu_custom_call.1']
    #allocation4 [shape = 's32[1]{0}', space=sflag, size = 0x4, scoped, tag = 'scoped memory for tpu_custom_call.1']
    #allocation5 [shape = 'u8[131072]{0}', space=vmem, size = 0x20000, scoped, tag = 'input window, operand 1, single buffered']
    #allocation6 [shape = 's32[1]{0}', space=sflag, size = 0x4, scoped, tag = 'scoped memory for tpu_custom_call.1']
    #allocation7 [shape = 'u8[32768]{0}', space=vmem, size = 0x8000, scoped, tag = 'input window, operand 3, single buffered']
    #allocation8 [shape = 'u8[32768]{0}', space=vmem, size = 0x8000, scoped, tag = 'input window, operand 5, single buffered']
    #allocation9 [shape = 's32[1]{0}', space=sflag, size = 0x4, scoped, tag = 'scoped memory for tpu_custom_call.1']
    #allocation10 [shape = 'u8[16384]{0}', space=vmem, size = 0x4000, scoped, tag = 'input window, operand 7, single buffered']
    #allocation11 [shape = 'u8[16384]{0}', space=vmem, size = 0x4000, scoped, tag = 'input window, operand 9, single buffered']
    #allocation12 [shape = 's32[1]{0}', space=sflag, size = 0x4, scoped, tag = 'scoped memory for tpu_custom_call.1']
    #allocation13 [shape = 'u8[16384]{0}', space=vmem, size = 0x4000, scoped, tag = 'input window, operand 11, single buffered']
    #allocation14 [shape = 'u8[16384]{0}', space=vmem, size = 0x4000, scoped, tag = 'input window, operand 13, single buffered']
    #allocation15 [shape = 's32[1]{0}', space=sflag, size = 0x4, scoped, tag = 'scoped memory for tpu_custom_call.1']
    #allocation16 [shape = 'u8[32768]{0}', space=vmem, size = 0x8000, scoped, tag = 'input window, operand 15, single buffered']
    #allocation17 [shape = 'u8[4096]{0}', space=vmem, size = 0x1000, scoped, tag = 'output window, operand 0, single buffered']
    #allocation18 [shape = 'u8[4096]{0}', space=vmem, size = 0x1000, scoped, tag = 'output window, operand 1, single buffered']
    #allocation19 [shape = 's32[1]{0}', space=sflag, size = 0x4, scoped, tag = 'scoped memory for tpu_custom_call.1']
    #allocation20 [shape = 'u8[8192]{0}', space=vmem, size = 0x2000, scoped, tag = 'output window, operand 2, single buffered']
    %25 = vsyncpa [#allocation3], 0
    %26 = vsyncpa [#allocation6], 0
    %27 = vsyncpa [#allocation9], 0
    %28 = vsyncpa [#allocation12], 0
    %29 = vsyncpa [#allocation15], 0
    %30 = vsyncpa [#allocation4], 0
    %31 = vsyncpa [#allocation19], 0
    // Predicated region
    $region2: #{tpu_custom_call.1} parent=1 // pred_check
      _
    $region3: #{tpu_custom_call.1} parent=1 // pred_check_branch
      %33 = sbr.rel (0) target = $region5
    $region4: #{tpu_custom_call.1} parent=1 // pred_region
      %s35 = ssub.s32 256, 256
      %36 = vsyncadd [#allocation3], %s35
      %s38 = sshll.u32 [#allocation2], 4
      %s39 = int_to_ptr.vmem [resolvable:$true] %s38
      %41 = dma.hbm_to_vmem [thread:$0]  %s0, 256, %s39, [#allocation3]
    $region5: #{tpu_custom_call.1} parent=1 // pred_fallthru
      _
    // Predicated region
    $region6: #{tpu_custom_call.1} parent=1 // pred_check
      _
    $region7: #{tpu_custom_call.1} parent=1 // pred_check_branch
      %43 = sbr.rel (0) target = $region9
    $region8: #{tpu_custom_call.1} parent=1 // pred_region
      %s45 = ssub.s32 4096, 4096
      %46 = vsyncadd [#allocation6], %s45
      %s47 = sshll.u32 [#allocation5], 4
      %s48 = int_to_ptr.vmem [resolvable:$true] %s47
      %53 = dma.hbm_to_vmem [thread:$0]  %s1, 4096, %s48, [#allocation6], 128, 128, 8
    $region9: #{tpu_custom_call.1} parent=1 // pred_fallthru
      _
    // Predicated region
    $region10: #{tpu_custom_call.1} parent=1 // pred_check
      _
    $region11: #{tpu_custom_call.1} parent=1 // pred_check_branch
      %55 = sbr.rel (0) target = $region13
    $region12: #{tpu_custom_call.1} parent=1 // pred_region
      _
    $region13: #{tpu_custom_call.1} parent=1 // pred_fallthru
      _
    // Predicated region
    $region14: #{tpu_custom_call.1} parent=1 // pred_check
      _
    $region15: #{tpu_custom_call.1} parent=1 // pred_check_branch
      %57 = sbr.rel (0) target = $region17
    $region16: #{tpu_custom_call.1} parent=1 // pred_region
      %s59 = ssub.s32 1024, 1024
      %60 = vsyncadd [#allocation6], %s59
      %s61 = sshll.u32 [#allocation7], 4
      %s62 = int_to_ptr.vmem [resolvable:$true] %s61
      %67 = dma.hbm_to_vmem [thread:$0]  %s3, 1024, %s62, [#allocation6], 64, 64, 4
    $region17: #{tpu_custom_call.1} parent=1 // pred_fallthru
      _
    // Predicated region
    $region18: #{tpu_custom_call.1} parent=1 // pred_check
      _
    $region19: #{tpu_custom_call.1} parent=1 // pred_check_branch
      %69 = sbr.rel (0) target = $region21
    $region20: #{tpu_custom_call.1} parent=1 // pred_region
      _
    $region21: #{tpu_custom_call.1} parent=1 // pred_fallthru
      _
    // Predicated region
    $region22: #{tpu_custom_call.1} parent=1 // pred_check
      _
    $region23: #{tpu_custom_call.1} parent=1 // pred_check_branch
      %71 = sbr.rel (0) target = $region25
    $region24: #{tpu_custom_call.1} parent=1 // pred_region
      %s73 = ssub.s32 1024, 1024
      %74 = vsyncadd [#allocation9], %s73
      %s75 = sshll.u32 [#allocation8], 4
      %s76 = int_to_ptr.vmem [resolvable:$true] %s75
      %81 = dma.hbm_to_vmem [thread:$0]  %s5, 1024, %s76, [#allocation9], 64, 64, 4
    $region25: #{tpu_custom_call.1} parent=1 // pred_fallthru
      _
    // Predicated region
    $region26: #{tpu_custom_call.1} parent=1 // pred_check
      _
    $region27: #{tpu_custom_call.1} parent=1 // pred_check_branch
      %83 = sbr.rel (0) target = $region29
    $region28: #{tpu_custom_call.1} parent=1 // pred_region
      _
    $region29: #{tpu_custom_call.1} parent=1 // pred_fallthru
      _
    // Predicated region
    $region30: #{tpu_custom_call.1} parent=1 // pred_check
      _
    $region31: #{tpu_custom_call.1} parent=1 // pred_check_branch
      %85 = sbr.rel (0) target = $region33
    $region32: #{tpu_custom_call.1} parent=1 // pred_region
      %s87 = ssub.s32 512, 512
      %88 = vsyncadd [#allocation9], %s87
      %s89 = sshll.u32 [#allocation10], 4
      %s90 = int_to_ptr.vmem [resolvable:$true] %s89
      %95 = dma.hbm_to_vmem [thread:$0]  %s7, 512, %s90, [#allocation9], 64, 64, 4
    $region33: #{tpu_custom_call.1} parent=1 // pred_fallthru
      _
    // Predicated region
    $region34: #{tpu_custom_call.1} parent=1 // pred_check
      _
    $region35: #{tpu_custom_call.1} parent=1 // pred_check_branch
      %97 = sbr.rel (0) target = $region37
    $region36: #{tpu_custom_call.1} parent=1 // pred_region
      _
    $region37: #{tpu_custom_call.1} parent=1 // pred_fallthru
      _
    // Predicated region
    $region38: #{tpu_custom_call.1} parent=1 // pred_check
      _
    $region39: #{tpu_custom_call.1} parent=1 // pred_check_branch
      %99 = sbr.rel (0) target = $region41
    $region40: #{tpu_custom_call.1} parent=1 // pred_region
      %s101 = ssub.s32 512, 512
      %102 = vsyncadd [#allocation12], %s101
      %s103 = sshll.u32 [#allocation11], 4
      %s104 = int_to_ptr.vmem [resolvable:$true] %s103
      %109 = dma.hbm_to_vmem [thread:$0]  %s9, 512, %s104, [#allocation12], 64, 64, 4
    $region41: #{tpu_custom_call.1} parent=1 // pred_fallthru
      _
    // Predicated region
    $region42: #{tpu_custom_call.1} parent=1 // pred_check
      _
    $region43: #{tpu_custom_call.1} parent=1 // pred_check_branch
      %111 = sbr.rel (0) target = $region45
    $region44: #{tpu_custom_call.1} parent=1 // pred_region
      _
    $region45: #{tpu_custom_call.1} parent=1 // pred_fallthru
      _
    // Predicated region
    $region46: #{tpu_custom_call.1} parent=1 // pred_check
      _
    $region47: #{tpu_custom_call.1} parent=1 // pred_check_branch
      %113 = sbr.rel (0) target = $region49
    $region48: #{tpu_custom_call.1} parent=1 // pred_region
      %s115 = ssub.s32 512, 512
      %116 = vsyncadd [#allocation12], %s115
      %s117 = sshll.u32 [#allocation13], 4
      %s118 = int_to_ptr.vmem [resolvable:$true] %s117
      %123 = dma.hbm_to_vmem [thread:$0]  %s11, 512, %s118, [#allocation12], 64, 64, 4
    $region49: #{tpu_custom_call.1} parent=1 // pred_fallthru
      _
    // Predicated region
    $region50: #{tpu_custom_call.1} parent=1 // pred_check
      _
    $region51: #{tpu_custom_call.1} parent=1 // pred_check_branch
      %125 = sbr.rel (0) target = $region53
    $region52: #{tpu_custom_call.1} parent=1 // pred_region
      _
    $region53: #{tpu_custom_call.1} parent=1 // pred_fallthru
      _
    // Predicated region
    $region54: #{tpu_custom_call.1} parent=1 // pred_check
      _
    $region55: #{tpu_custom_call.1} parent=1 // pred_check_branch
      %127 = sbr.rel (0) target = $region57
    $region56: #{tpu_custom_call.1} parent=1 // pred_region
      %s129 = ssub.s32 512, 512
      %130 = vsyncadd [#allocation15], %s129
      %s131 = sshll.u32 [#allocation14], 4
      %s132 = int_to_ptr.vmem [resolvable:$true] %s131
      %137 = dma.hbm_to_vmem [thread:$0]  %s13, 512, %s132, [#allocation15], 64, 64, 4
    $region57: #{tpu_custom_call.1} parent=1 // pred_fallthru
      _
    // Predicated region
    $region58: #{tpu_custom_call.1} parent=1 // pred_check
      _
    $region59: #{tpu_custom_call.1} parent=1 // pred_check_branch
      %139 = sbr.rel (0) target = $region61
    $region60: #{tpu_custom_call.1} parent=1 // pred_region
      _
    $region61: #{tpu_custom_call.1} parent=1 // pred_fallthru
      _
    // Predicated region
    $region62: #{tpu_custom_call.1} parent=1 // pred_check
      _
    $region63: #{tpu_custom_call.1} parent=1 // pred_check_branch
      %141 = sbr.rel (0) target = $region65
    $region64: #{tpu_custom_call.1} parent=1 // pred_region
      %s143 = ssub.s32 1024, 1024
      %144 = vsyncadd [#allocation15], %s143
      %s145 = sshll.u32 [#allocation16], 4
      %s146 = int_to_ptr.vmem [resolvable:$true] %s145
      %151 = dma.hbm_to_vmem [thread:$0]  %s15, 1024, %s146, [#allocation15], 128, 128, 8
    $region65: #{tpu_custom_call.1} parent=1 // pred_fallthru
      _
    // Predicated region
    $region66: #{tpu_custom_call.1} parent=1 // pred_check
      _
    $region67: #{tpu_custom_call.1} parent=1 // pred_check_branch
      %153 = sbr.rel (0) target = $region69
    $region68: #{tpu_custom_call.1} parent=1 // pred_region
      _
    $region69: #{tpu_custom_call.1} parent=1 // pred_fallthru
      _
    // Predicated region
    $region70: #{tpu_custom_call.1} parent=1 // pred_check
      _
    $region71: #{tpu_custom_call.1} parent=1 // pred_check_branch
      %155 = sbr.rel (0) target = $region73
    $region72: #{tpu_custom_call.1} parent=1 // pred_region
      %156 = dma.done [#allocation3], 256
    $region73: #{tpu_custom_call.1} parent=1 // pred_fallthru
      _
    // Predicated region
    $region74: #{tpu_custom_call.1} parent=1 // pred_check
      _
    $region75: #{tpu_custom_call.1} parent=1 // pred_check_branch
      %158 = sbr.rel (0) target = $region77
    $region76: #{tpu_custom_call.1} parent=1 // pred_region
      %159 = dma.done [#allocation6], 4096
    $region77: #{tpu_custom_call.1} parent=1 // pred_fallthru
      _
    // Predicated region
    $region78: #{tpu_custom_call.1} parent=1 // pred_check
      _
    $region79: #{tpu_custom_call.1} parent=1 // pred_check_branch
      %161 = sbr.rel (0) target = $region81
    $region80: #{tpu_custom_call.1} parent=1 // pred_region
      %162 = dma.done [#allocation6], 1024
    $region81: #{tpu_custom_call.1} parent=1 // pred_fallthru
      _
    // Predicated region
    $region82: #{tpu_custom_call.1} parent=1 // pred_check
      _
    $region83: #{tpu_custom_call.1} parent=1 // pred_check_branch
      %164 = sbr.rel (0) target = $region85
    $region84: #{tpu_custom_call.1} parent=1 // pred_region
      %165 = dma.done [#allocation9], 1024
    $region85: #{tpu_custom_call.1} parent=1 // pred_fallthru
      _
    // Predicated region
    $region86: #{tpu_custom_call.1} parent=1 // pred_check
      _
    $region87: #{tpu_custom_call.1} parent=1 // pred_check_branch
      %167 = sbr.rel (0) target = $region89
    $region88: #{tpu_custom_call.1} parent=1 // pred_region
      %168 = dma.done [#allocation9], 512
    $region89: #{tpu_custom_call.1} parent=1 // pred_fallthru
      _
    // Predicated region
    $region90: #{tpu_custom_call.1} parent=1 // pred_check
      _
    $region91: #{tpu_custom_call.1} parent=1 // pred_check_branch
      %170 = sbr.rel (0) target = $region93
    $region92: #{tpu_custom_call.1} parent=1 // pred_region
      %171 = dma.done [#allocation12], 512
    $region93: #{tpu_custom_call.1} parent=1 // pred_fallthru
      _
    // Predicated region
    $region94: #{tpu_custom_call.1} parent=1 // pred_check
      _
    $region95: #{tpu_custom_call.1} parent=1 // pred_check_branch
      %173 = sbr.rel (0) target = $region97
    $region96: #{tpu_custom_call.1} parent=1 // pred_region
      %174 = dma.done [#allocation12], 512
    $region97: #{tpu_custom_call.1} parent=1 // pred_fallthru
      _
    // Predicated region
    $region98: #{tpu_custom_call.1} parent=1 // pred_check
      _
    $region99: #{tpu_custom_call.1} parent=1 // pred_check_branch
      %176 = sbr.rel (0) target = $region101
    $region100: #{tpu_custom_call.1} parent=1 // pred_region
      %177 = dma.done [#allocation15], 512
    $region101: #{tpu_custom_call.1} parent=1 // pred_fallthru
      _
    // Predicated region
    $region102: #{tpu_custom_call.1} parent=1 // pred_check
      _
    $region103: #{tpu_custom_call.1} parent=1 // pred_check_branch
      %179 = sbr.rel (0) target = $region105
    $region104: #{tpu_custom_call.1} parent=1 // pred_region
      %180 = dma.done [#allocation15], 1024
    $region105: #{tpu_custom_call.1} parent=1 // pred_fallthru
      _
    %v182 = vld [vmem:[#allocation2] sm:$0xff]
    %v183 = vld [vmem:[#allocation2 + $0x8] sm:$0xff]
    %v184 = vpack.c.bf16 %v182, %v182
    %v185 = vpack.c.bf16 %v183, %v183
    %v186 = vld [vmem:[#allocation5] sm:$0xff]
    %v187 = vld [vmem:[#allocation5 + $0x8] sm:$0xff]
    %v188 = vld [vmem:[#allocation5 + $0x10] sm:$0xff]
    %v189 = vld [vmem:[#allocation5 + $0x18] sm:$0xff]
    %v190 = vld [vmem:[#allocation5 + $0x20] sm:$0xff]
    %v191 = vld [vmem:[#allocation5 + $0x28] sm:$0xff]
    %v192 = vld [vmem:[#allocation5 + $0x30] sm:$0xff]
    %v193 = vld [vmem:[#allocation5 + $0x38] sm:$0xff]
    %v194 = vld [vmem:[#allocation5 + $0x40] sm:$0xff]
    %v195 = vld [vmem:[#allocation5 + $0x48] sm:$0xff]
    %v196 = vld [vmem:[#allocation5 + $0x50] sm:$0xff]
    %v197 = vld [vmem:[#allocation5 + $0x58] sm:$0xff]
    %v198 = vld [vmem:[#allocation5 + $0x60] sm:$0xff]
    %v199 = vld [vmem:[#allocation5 + $0x68] sm:$0xff]
    %v200 = vld [vmem:[#allocation5 + $0x70] sm:$0xff]
    %v201 = vld [vmem:[#allocation5 + $0x78] sm:$0xff]
    %v202 = vld [vmem:[#allocation5 + $0x80] sm:$0xff]
    %v203 = vld [vmem:[#allocation5 + $0x88] sm:$0xff]
    %v204 = vld [vmem:[#allocation5 + $0x90] sm:$0xff]
    %v205 = vld [vmem:[#allocation5 + $0x98] sm:$0xff]
    %v206 = vld [vmem:[#allocation5 + $0xa0] sm:$0xff]
    %v207 = vld [vmem:[#allocation5 + $0xa8] sm:$0xff]
    %v208 = vld [vmem:[#allocation5 + $0xb0] sm:$0xff]
    %v209 = vld [vmem:[#allocation5 + $0xb8] sm:$0xff]
    %v210 = vld [vmem:[#allocation5 + $0xc0] sm:$0xff]
    %v211 = vld [vmem:[#allocation5 + $0xc8] sm:$0xff]
    %v212 = vld [vmem:[#allocation5 + $0xd0] sm:$0xff]
    %v213 = vld [vmem:[#allocation5 + $0xd8] sm:$0xff]
    %v214 = vld [vmem:[#allocation5 + $0xe0] sm:$0xff]
    %v215 = vld [vmem:[#allocation5 + $0xe8] sm:$0xff]
    %v216 = vld [vmem:[#allocation5 + $0xf0] sm:$0xff]
    %v217 = vld [vmem:[#allocation5 + $0xf8] sm:$0xff]
    %v218 = vld [vmem:[%s2] sm:$0x3]
    %v220 = vlaneseq
    %v221 = vshrl.u32 %v220, 7
    %v222 = vsub.s32 0, %v221
    %v223 = vrot.slane %v218, %v222
    %v224 = vlaneseq
    %v225 = vshrl.u32 %v224, 7
    %v226 = vsub.s32 1, %v225
    %v227 = vrot.slane %v218, %v226
    %v262 = vunpack.c.l.b16 %v186
    %v263 = vunpack.c.h.b16 %v186
    %v264 = vunpack.c.l.b16 %v187
    %v265 = vunpack.c.h.b16 %v187
    %v266 = vunpack.c.l.b16 %v188
    %v267 = vunpack.c.h.b16 %v188
    %v268 = vunpack.c.l.b16 %v189
    %v269 = vunpack.c.h.b16 %v189
    %v270 = vunpack.c.l.b16 %v190
    %v271 = vunpack.c.h.b16 %v190
    %v272 = vunpack.c.l.b16 %v191
    %v273 = vunpack.c.h.b16 %v191
    %v274 = vunpack.c.l.b16 %v192
    %v275 = vunpack.c.h.b16 %v192
    %v276 = vunpack.c.l.b16 %v193
    %v277 = vunpack.c.h.b16 %v193
    %v278 = vunpack.c.l.b16 %v194
    %v279 = vunpack.c.h.b16 %v194
    %v280 = vunpack.c.l.b16 %v195
    %v281 = vunpack.c.h.b16 %v195
    %v282 = vunpack.c.l.b16 %v196
    %v283 = vunpack.c.h.b16 %v196
    %v284 = vunpack.c.l.b16 %v197
    %v285 = vunpack.c.h.b16 %v197
    %v286 = vunpack.c.l.b16 %v198
    %v287 = vunpack.c.h.b16 %v198
    %v288 = vunpack.c.l.b16 %v199
    %v289 = vunpack.c.h.b16 %v199
    %v290 = vunpack.c.l.b16 %v200
    %v291 = vunpack.c.h.b16 %v200
    %v292 = vunpack.c.l.b16 %v201
    %v293 = vunpack.c.h.b16 %v201
    %v294 = vunpack.c.l.b16 %v202
    %v295 = vunpack.c.h.b16 %v202
    %v296 = vunpack.c.l.b16 %v203
    %v297 = vunpack.c.h.b16 %v203
    %v298 = vunpack.c.l.b16 %v204
    %v299 = vunpack.c.h.b16 %v204
    %v300 = vunpack.c.l.b16 %v205
    %v301 = vunpack.c.h.b16 %v205
    %v302 = vunpack.c.l.b16 %v206
    %v303 = vunpack.c.h.b16 %v206
    %v304 = vunpack.c.l.b16 %v207
    %v305 = vunpack.c.h.b16 %v207
    %v306 = vunpack.c.l.b16 %v208
    %v307 = vunpack.c.h.b16 %v208
    %v308 = vunpack.c.l.b16 %v209
    %v309 = vunpack.c.h.b16 %v209
    %v310 = vunpack.c.l.b16 %v210
    %v311 = vunpack.c.h.b16 %v210
    %v312 = vunpack.c.l.b16 %v211
    %v313 = vunpack.c.h.b16 %v211
    %v314 = vunpack.c.l.b16 %v212
    %v315 = vunpack.c.h.b16 %v212
    %v316 = vunpack.c.l.b16 %v213
    %v317 = vunpack.c.h.b16 %v213
    %v318 = vunpack.c.l.b16 %v214
    %v319 = vunpack.c.h.b16 %v214
    %v320 = vunpack.c.l.b16 %v215
    %v321 = vunpack.c.h.b16 %v215
    %v322 = vunpack.c.l.b16 %v216
    %v323 = vunpack.c.h.b16 %v216
    %v324 = vunpack.c.l.b16 %v217
    %v325 = vunpack.c.h.b16 %v217
    %v326 = vpack.c.b16 %v264, %v262
    %v327 = vpack.c.b16 %v265, %v263
    %v328 = vpack.c.b16 %v268, %v266
    %v329 = vpack.c.b16 %v269, %v267
    %v330 = vpack.c.b16 %v272, %v270
    %v331 = vpack.c.b16 %v273, %v271
    %v332 = vpack.c.b16 %v276, %v274
    %v333 = vpack.c.b16 %v277, %v275
    %v334 = vpack.c.b16 %v280, %v278
    %v335 = vpack.c.b16 %v281, %v279
    %v336 = vpack.c.b16 %v284, %v282
    %v337 = vpack.c.b16 %v285, %v283
    %v338 = vpack.c.b16 %v288, %v286
    %v339 = vpack.c.b16 %v289, %v287
    %v340 = vpack.c.b16 %v292, %v290
    %v341 = vpack.c.b16 %v293, %v291
    %v342 = vpack.c.b16 %v296, %v294
    %v343 = vpack.c.b16 %v297, %v295
    %v344 = vpack.c.b16 %v300, %v298
    %v345 = vpack.c.b16 %v301, %v299
    %v346 = vpack.c.b16 %v304, %v302
    %v347 = vpack.c.b16 %v305, %v303
    %v348 = vpack.c.b16 %v308, %v306
    %v349 = vpack.c.b16 %v309, %v307
    %v350 = vpack.c.b16 %v312, %v310
    %v351 = vpack.c.b16 %v313, %v311
    %v352 = vpack.c.b16 %v316, %v314
    %v353 = vpack.c.b16 %v317, %v315
    %v354 = vpack.c.b16 %v320, %v318
    %v355 = vpack.c.b16 %v321, %v319
    %v356 = vpack.c.b16 %v324, %v322
    %v357 = vpack.c.b16 %v325, %v323
    %390 = vmatprep.subr.bf16.mxu0 %v341
    %391 = vmatpush1.bf16.msra.mxu0 %v340
    %392 = vmatprep.subr.bf16.mxu0 %v339
    %393 = vmatpush1.bf16.msra.mxu0 %v338
    %394 = vmatprep.subr.bf16.mxu0 %v337
    %395 = vmatpush1.bf16.msra.mxu0 %v336
    %396 = vmatprep.subr.bf16.mxu0 %v335
    %397 = vmatpush1.bf16.msra.mxu0 %v334
    %398 = vmatprep.subr.bf16.mxu0 %v333
    %399 = vmatpush1.bf16.msra.mxu0 %v332
    %400 = vmatprep.subr.bf16.mxu0 %v331
    %401 = vmatpush1.bf16.msra.mxu0 %v330
    %402 = vmatprep.subr.bf16.mxu0 %v329
    %403 = vmatpush1.bf16.msra.mxu0 %v328
    %404 = vmatprep.subr.bf16.mxu0 %v327
    %405 = vmatpush1.bf16.msra.mxu0 %v326
    %406 = vmatprep.subr.bf16.mxu0 %v357
    %407 = vmatpush2.bf16.msra.mxu0 %v356
    %408 = vmatprep.subr.bf16.mxu0 %v355
    %409 = vmatpush2.bf16.msra.mxu0 %v354
    %410 = vmatprep.subr.bf16.mxu0 %v353
    %411 = vmatpush2.bf16.msra.mxu0 %v352
    %412 = vmatprep.subr.bf16.mxu0 %v351
    %413 = vmatpush2.bf16.msra.mxu0 %v350
    %414 = vmatprep.subr.bf16.mxu0 %v349
    %415 = vmatpush2.bf16.msra.mxu0 %v348
    %416 = vmatprep.subr.bf16.mxu0 %v347
    %417 = vmatpush2.bf16.msra.mxu0 %v346
    %418 = vmatprep.subr.bf16.mxu0 %v345
    %419 = vmatpush2.bf16.msra.mxu0 %v344
    %420 = vmatprep.subr.bf16.mxu0 %v343
    %421 = vmatpush2.bf16.msra.mxu0 %v342
    %422 = vmatprep.mubr.bf16.mxu0 %v185
    %423 = vmatmul.mubr.bf16.gmra.mxu0 %v184
    %v424 = vpop.f32.mrf.mxu0
    %v425 = vadd.f32 %v223, %v424
    %v426 = vpop.f32.mrf.mxu0
    %v427 = vadd.f32 %v227, %v426
    %v428 = vpop.f32.mrf.mxu0
    %v429 = vpop.f32.mrf.mxu0
    %430 = vdwg.mxu0
    %v431 = vmax.f32 %v425, 0.0
    %v432 = vpack.c.bf16 %v431, %v431
    %v433 = vld [vmem:[#allocation7] sm:$0xf]
    %v434 = vld [vmem:[#allocation7 + $0x4] sm:$0xf]
    %v435 = vld [vmem:[#allocation7 + $0x8] sm:$0xf]
    %v436 = vld [vmem:[#allocation7 + $0xc] sm:$0xf]
    %v437 = vld [vmem:[#allocation7 + $0x10] sm:$0xf]
    %v438 = vld [vmem:[#allocation7 + $0x14] sm:$0xf]
    %v439 = vld [vmem:[#allocation7 + $0x18] sm:$0xf]
    %v440 = vld [vmem:[#allocation7 + $0x1c] sm:$0xf]
    %v441 = vld [vmem:[#allocation7 + $0x20] sm:$0xf]
    %v442 = vld [vmem:[#allocation7 + $0x24] sm:$0xf]
    %v443 = vld [vmem:[#allocation7 + $0x28] sm:$0xf]
    %v444 = vld [vmem:[#allocation7 + $0x2c] sm:$0xf]
    %v445 = vld [vmem:[#allocation7 + $0x30] sm:$0xf]
    %v446 = vld [vmem:[#allocation7 + $0x34] sm:$0xf]
    %v447 = vld [vmem:[#allocation7 + $0x38] sm:$0xf]
    %v448 = vld [vmem:[#allocation7 + $0x3c] sm:$0xf]
    %v449 = vld [vmem:[%s4] sm:$0x1]
    %v451 = vlaneseq
    %v452 = vshrl.u32 %v451, 7
    %v453 = vsub.s32 0, %v452
    %v454 = vrot.slane %v449, %v453
    %v472 = vunpack.c.l.b16 %v433
    %v473 = vunpack.c.l.b16 %v434
    %v474 = vunpack.c.l.b16 %v435
    %v475 = vunpack.c.l.b16 %v436
    %v476 = vunpack.c.l.b16 %v437
    %v477 = vunpack.c.l.b16 %v438
    %v478 = vunpack.c.l.b16 %v439
    %v479 = vunpack.c.l.b16 %v440
    %v480 = vunpack.c.l.b16 %v441
    %v481 = vunpack.c.l.b16 %v442
    %v482 = vunpack.c.l.b16 %v443
    %v483 = vunpack.c.l.b16 %v444
    %v484 = vunpack.c.l.b16 %v445
    %v485 = vunpack.c.l.b16 %v446
    %v486 = vunpack.c.l.b16 %v447
    %v487 = vunpack.c.l.b16 %v448
    %v488 = vpack.c.b16 %v473, %v472
    %v489 = vpack.c.b16 %v475, %v474
    %v490 = vpack.c.b16 %v477, %v476
    %v491 = vpack.c.b16 %v479, %v478
    %v492 = vpack.c.b16 %v481, %v480
    %v493 = vpack.c.b16 %v483, %v482
    %v494 = vpack.c.b16 %v485, %v484
    %v495 = vpack.c.b16 %v487, %v486
    %504 = vmatprep.subr.bf16.mxu0 0
    %505 = vmatpush1.bf16.msra.mxu0 %v495
    %506 = vmatprep.subr.bf16.mxu0 0
    %507 = vmatpush1.bf16.msra.mxu0 %v494
    %508 = vmatprep.subr.bf16.mxu0 0
    %509 = vmatpush1.bf16.msra.mxu0 %v493
    %510 = vmatprep.subr.bf16.mxu0 0
    %511 = vmatpush1.bf16.msra.mxu0 %v492
    %512 = vmatprep.subr.bf16.mxu0 0
    %513 = vmatpush1.bf16.msra.mxu0 %v491
    %514 = vmatprep.subr.bf16.mxu0 0
    %515 = vmatpush1.bf16.msra.mxu0 %v490
    %516 = vmatprep.subr.bf16.mxu0 0
    %517 = vmatpush1.bf16.msra.mxu0 %v489
    %518 = vmatprep.subr.bf16.mxu0 0
    %519 = vmatpush1.bf16.msra.mxu0 %v488
    %520 = vmatprep.subr.bf16.mxu0 0
    %521 = vmatpush2.bf16.msra.mxu0 0
    %522 = vmatprep.subr.bf16.mxu0 0
    %523 = vmatpush2.bf16.msra.mxu0 0
    %524 = vmatprep.subr.bf16.mxu0 0
    %525 = vmatpush2.bf16.msra.mxu0 0
    %526 = vmatprep.subr.bf16.mxu0 0
    %527 = vmatpush2.bf16.msra.mxu0 0
    %528 = vmatprep.subr.bf16.mxu0 0
    %529 = vmatpush2.bf16.msra.mxu0 0
    %530 = vmatprep.subr.bf16.mxu0 0
    %531 = vmatpush2.bf16.msra.mxu0 0
    %532 = vmatprep.subr.bf16.mxu0 0
    %533 = vmatpush2.bf16.msra.mxu0 0
    %534 = vmatprep.subr.bf16.mxu0 0
    %535 = vmatpush2.bf16.msra.mxu0 0
    %536 = vmatprep.mubr.bf16.mxu0 0
    %537 = vmatmul.mubr.bf16.gmra.mxu0 %v432
    %v538 = vpop.f32.mrf.mxu0
    %v539 = vadd.f32 %v454, %v538
    %v540 = vpop.f32.mrf.mxu0
    %v541 = vpop.f32.mrf.mxu0
    %v542 = vpop.f32.mrf.mxu0
    %543 = vdwg.mxu0
    %v544 = vmax.f32 %v539, 0.0
    %v545 = vadd.f32 %v544, %v427
    %v546 = vpack.c.bf16 %v545, %v545
    %v547 = vld [vmem:[#allocation8] sm:$0xf]
    %v548 = vld [vmem:[#allocation8 + $0x4] sm:$0xf]
    %v549 = vld [vmem:[#allocation8 + $0x8] sm:$0xf]
    %v550 = vld [vmem:[#allocation8 + $0xc] sm:$0xf]
    %v551 = vld [vmem:[#allocation8 + $0x10] sm:$0xf]
    %v552 = vld [vmem:[#allocation8 + $0x14] sm:$0xf]
    %v553 = vld [vmem:[#allocation8 + $0x18] sm:$0xf]
    %v554 = vld [vmem:[#allocation8 + $0x1c] sm:$0xf]
    %v555 = vld [vmem:[#allocation8 + $0x20] sm:$0xf]
    %v556 = vld [vmem:[#allocation8 + $0x24] sm:$0xf]
    %v557 = vld [vmem:[#allocation8 + $0x28] sm:$0xf]
    %v558 = vld [vmem:[#allocation8 + $0x2c] sm:$0xf]
    %v559 = vld [vmem:[#allocation8 + $0x30] sm:$0xf]
    %v560 = vld [vmem:[#allocation8 + $0x34] sm:$0xf]
    %v561 = vld [vmem:[#allocation8 + $0x38] sm:$0xf]
    %v562 = vld [vmem:[#allocation8 + $0x3c] sm:$0xf]
    %v563 = vld [vmem:[%s6] sm:$0x1]
    %v565 = vlaneseq
    %v566 = vshrl.u32 %v565, 7
    %v567 = vsub.s32 0, %v566
    %v568 = vrot.slane %v563, %v567
    %v586 = vunpack.c.l.b16 %v547
    %v587 = vunpack.c.l.b16 %v548
    %v588 = vunpack.c.l.b16 %v549
    %v589 = vunpack.c.l.b16 %v550
    %v590 = vunpack.c.l.b16 %v551
    %v591 = vunpack.c.l.b16 %v552
    %v592 = vunpack.c.l.b16 %v553
    %v593 = vunpack.c.l.b16 %v554
    %v594 = vunpack.c.l.b16 %v555
    %v595 = vunpack.c.l.b16 %v556
    %v596 = vunpack.c.l.b16 %v557
    %v597 = vunpack.c.l.b16 %v558
    %v598 = vunpack.c.l.b16 %v559
    %v599 = vunpack.c.l.b16 %v560
    %v600 = vunpack.c.l.b16 %v561
    %v601 = vunpack.c.l.b16 %v562
    %v602 = vpack.c.b16 %v587, %v586
    %v603 = vpack.c.b16 %v589, %v588
    %v604 = vpack.c.b16 %v591, %v590
    %v605 = vpack.c.b16 %v593, %v592
    %v606 = vpack.c.b16 %v595, %v594
    %v607 = vpack.c.b16 %v597, %v596
    %v608 = vpack.c.b16 %v599, %v598
    %v609 = vpack.c.b16 %v601, %v600
    %618 = vmatprep.subr.bf16.mxu0 0
    %619 = vmatpush1.bf16.msra.mxu0 %v609
    %620 = vmatprep.subr.bf16.mxu0 0
    %621 = vmatpush1.bf16.msra.mxu0 %v608
    %622 = vmatprep.subr.bf16.mxu0 0
    %623 = vmatpush1.bf16.msra.mxu0 %v607
    %624 = vmatprep.subr.bf16.mxu0 0
    %625 = vmatpush1.bf16.msra.mxu0 %v606
    %626 = vmatprep.subr.bf16.mxu0 0
    %627 = vmatpush1.bf16.msra.mxu0 %v605
    %628 = vmatprep.subr.bf16.mxu0 0
    %629 = vmatpush1.bf16.msra.mxu0 %v604
    %630 = vmatprep.subr.bf16.mxu0 0
    %631 = vmatpush1.bf16.msra.mxu0 %v603
    %632 = vmatprep.subr.bf16.mxu0 0
    %633 = vmatpush1.bf16.msra.mxu0 %v602
    %634 = vmatprep.subr.bf16.mxu0 0
    %635 = vmatpush2.bf16.msra.mxu0 0
    %636 = vmatprep.subr.bf16.mxu0 0
    %637 = vmatpush2.bf16.msra.mxu0 0
    %638 = vmatprep.subr.bf16.mxu0 0
    %639 = vmatpush2.bf16.msra.mxu0 0
    %640 = vmatprep.subr.bf16.mxu0 0
    %641 = vmatpush2.bf16.msra.mxu0 0
    %642 = vmatprep.subr.bf16.mxu0 0
    %643 = vmatpush2.bf16.msra.mxu0 0
    %644 = vmatprep.subr.bf16.mxu0 0
    %645 = vmatpush2.bf16.msra.mxu0 0
    %646 = vmatprep.subr.bf16.mxu0 0
    %647 = vmatpush2.bf16.msra.mxu0 0
    %648 = vmatprep.subr.bf16.mxu0 0
    %649 = vmatpush2.bf16.msra.mxu0 0
    %650 = vmatprep.mubr.bf16.mxu0 0
    %651 = vmatmul.mubr.bf16.gmra.mxu0 %v546
    %v652 = vpop.f32.mrf.mxu0
    %v653 = vadd.f32 %v568, %v652
    %v654 = vpop.f32.mrf.mxu0
    %v655 = vpop.f32.mrf.mxu0
    %v656 = vpop.f32.mrf.mxu0
    %657 = vdwg.mxu0
    %v658 = vpack.c.bf16 %v653, %v653
    %v659 = vld [vmem:[#allocation10] sm:$0xf]
    %v660 = vld [vmem:[#allocation10 + $0x4] sm:$0xf]
    %v661 = vld [vmem:[#allocation10 + $0x8] sm:$0xf]
    %v662 = vld [vmem:[#allocation10 + $0xc] sm:$0xf]
    %v663 = vld [vmem:[#allocation10 + $0x10] sm:$0xf]
    %v664 = vld [vmem:[#allocation10 + $0x14] sm:$0xf]
    %v665 = vld [vmem:[#allocation10 + $0x18] sm:$0xf]
    %v666 = vld [vmem:[#allocation10 + $0x1c] sm:$0xf]
    %v667 = vld [vmem:[%s8] sm:$0x1]
    %v669 = vlaneseq
    %v670 = vshrl.u32 %v669, 7
    %v671 = vsub.s32 0, %v670
    %v672 = vrot.slane %v667, %v671
    %v682 = vunpack.c.l.b16 %v659
    %v683 = vunpack.c.l.b16 %v660
    %v684 = vunpack.c.l.b16 %v661
    %v685 = vunpack.c.l.b16 %v662
    %v686 = vunpack.c.l.b16 %v663
    %v687 = vunpack.c.l.b16 %v664
    %v688 = vunpack.c.l.b16 %v665
    %v689 = vunpack.c.l.b16 %v666
    %v690 = vpack.c.b16 %v683, %v682
    %v691 = vpack.c.b16 %v685, %v684
    %v692 = vpack.c.b16 %v687, %v686
    %v693 = vpack.c.b16 %v689, %v688
    %vm698 = vcmask 523264
    %v700 = vsel %vm698, %v658, 0
    %702 = vmatprep.subr.bf16.mxu0 0
    %703 = vmatpush1.bf16.msra.mxu0 0
    %704 = vmatprep.subr.bf16.mxu0 0
    %705 = vmatpush1.bf16.msra.mxu0 0
    %706 = vmatprep.subr.bf16.mxu0 0
    %707 = vmatpush1.bf16.msra.mxu0 0
    %708 = vmatprep.subr.bf16.mxu0 0
    %709 = vmatpush1.bf16.msra.mxu0 0
    %710 = vmatprep.subr.bf16.mxu0 0
    %711 = vmatpush1.bf16.msra.mxu0 %v693
    %712 = vmatprep.subr.bf16.mxu0 0
    %713 = vmatpush1.bf16.msra.mxu0 %v692
    %714 = vmatprep.subr.bf16.mxu0 0
    %715 = vmatpush1.bf16.msra.mxu0 %v691
    %716 = vmatprep.subr.bf16.mxu0 0
    %717 = vmatpush1.bf16.msra.mxu0 %v690
    %718 = vmatprep.subr.bf16.mxu0 0
    %719 = vmatpush2.bf16.msra.mxu0 0
    %720 = vmatprep.subr.bf16.mxu0 0
    %721 = vmatpush2.bf16.msra.mxu0 0
    %722 = vmatprep.subr.bf16.mxu0 0
    %723 = vmatpush2.bf16.msra.mxu0 0
    %724 = vmatprep.subr.bf16.mxu0 0
    %725 = vmatpush2.bf16.msra.mxu0 0
    %726 = vmatprep.subr.bf16.mxu0 0
    %727 = vmatpush2.bf16.msra.mxu0 0
    %728 = vmatprep.subr.bf16.mxu0 0
    %729 = vmatpush2.bf16.msra.mxu0 0
    %730 = vmatprep.subr.bf16.mxu0 0
    %731 = vmatpush2.bf16.msra.mxu0 0
    %732 = vmatprep.subr.bf16.mxu0 0
    %733 = vmatpush2.bf16.msra.mxu0 0
    %734 = vmatprep.mubr.bf16.mxu0 0
    %735 = vmatmul.mubr.bf16.gmra.mxu0 %v700
    %v736 = vpop.f32.mrf.mxu0
    %v737 = vadd.f32 %v672, %v736
    %v738 = vpop.f32.mrf.mxu0
    %v739 = vpop.f32.mrf.mxu0
    %v740 = vpop.f32.mrf.mxu0
    %741 = vdwg.mxu0
    %v742 = vtanh.pop %v737
    %v743 = vpack.c.bf16 %v742, %v742
    %v744 = vld [vmem:[#allocation11] sm:$0xf]
    %v745 = vld [vmem:[#allocation11 + $0x4] sm:$0xf]
    %v746 = vld [vmem:[#allocation11 + $0x8] sm:$0xf]
    %v747 = vld [vmem:[#allocation11 + $0xc] sm:$0xf]
    %v748 = vld [vmem:[#allocation11 + $0x10] sm:$0xf]
    %v749 = vld [vmem:[#allocation11 + $0x14] sm:$0xf]
    %v750 = vld [vmem:[#allocation11 + $0x18] sm:$0xf]
    %v751 = vld [vmem:[#allocation11 + $0x1c] sm:$0xf]
    %v752 = vld [vmem:[%s10] sm:$0x1]
    %v754 = vlaneseq
    %v755 = vshrl.u32 %v754, 7
    %v756 = vsub.s32 0, %v755
    %v757 = vrot.slane %v752, %v756
    %v767 = vunpack.c.l.b16 %v744
    %v768 = vunpack.c.l.b16 %v745
    %v769 = vunpack.c.l.b16 %v746
    %v770 = vunpack.c.l.b16 %v747
    %v771 = vunpack.c.l.b16 %v748
    %v772 = vunpack.c.l.b16 %v749
    %v773 = vunpack.c.l.b16 %v750
    %v774 = vunpack.c.l.b16 %v751
    %v775 = vpack.c.b16 %v768, %v767
    %v776 = vpack.c.b16 %v770, %v769
    %v777 = vpack.c.b16 %v772, %v771
    %v778 = vpack.c.b16 %v774, %v773
    %v784 = vsel %vm698, %v743, 0
    %786 = vmatprep.subr.bf16.mxu0 0
    %787 = vmatpush1.bf16.msra.mxu0 0
    %788 = vmatprep.subr.bf16.mxu0 0
    %789 = vmatpush1.bf16.msra.mxu0 0
    %790 = vmatprep.subr.bf16.mxu0 0
    %791 = vmatpush1.bf16.msra.mxu0 0
    %792 = vmatprep.subr.bf16.mxu0 0
    %793 = vmatpush1.bf16.msra.mxu0 0
    %794 = vmatprep.subr.bf16.mxu0 0
    %795 = vmatpush1.bf16.msra.mxu0 %v778
    %796 = vmatprep.subr.bf16.mxu0 0
    %797 = vmatpush1.bf16.msra.mxu0 %v777
    %798 = vmatprep.subr.bf16.mxu0 0
    %799 = vmatpush1.bf16.msra.mxu0 %v776
    %800 = vmatprep.subr.bf16.mxu0 0
    %801 = vmatpush1.bf16.msra.mxu0 %v775
    %802 = vmatprep.subr.bf16.mxu0 0
    %803 = vmatpush2.bf16.msra.mxu0 0
    %804 = vmatprep.subr.bf16.mxu0 0
    %805 = vmatpush2.bf16.msra.mxu0 0
    %806 = vmatprep.subr.bf16.mxu0 0
    %807 = vmatpush2.bf16.msra.mxu0 0
    %808 = vmatprep.subr.bf16.mxu0 0
    %809 = vmatpush2.bf16.msra.mxu0 0
    %810 = vmatprep.subr.bf16.mxu0 0
    %811 = vmatpush2.bf16.msra.mxu0 0
    %812 = vmatprep.subr.bf16.mxu0 0
    %813 = vmatpush2.bf16.msra.mxu0 0
    %814 = vmatprep.subr.bf16.mxu0 0
    %815 = vmatpush2.bf16.msra.mxu0 0
    %816 = vmatprep.subr.bf16.mxu0 0
    %817 = vmatpush2.bf16.msra.mxu0 0
    %818 = vmatprep.mubr.bf16.mxu0 0
    %819 = vmatmul.mubr.bf16.gmra.mxu0 %v784
    %v820 = vpop.f32.mrf.mxu0
    %v821 = vadd.f32 %v757, %v820
    %v822 = vpop.f32.mrf.mxu0
    %v823 = vpop.f32.mrf.mxu0
    %v824 = vpop.f32.mrf.mxu0
    %825 = vdwg.mxu0
    %v826 = vtanh.pop %v821
    %v827 = vpack.c.bf16 %v826, %v826
    %v828 = vld [vmem:[#allocation13] sm:$0xf]
    %v829 = vld [vmem:[#allocation13 + $0x4] sm:$0xf]
    %v830 = vld [vmem:[#allocation13 + $0x8] sm:$0xf]
    %v831 = vld [vmem:[#allocation13 + $0xc] sm:$0xf]
    %v832 = vld [vmem:[#allocation13 + $0x10] sm:$0xf]
    %v833 = vld [vmem:[#allocation13 + $0x14] sm:$0xf]
    %v834 = vld [vmem:[#allocation13 + $0x18] sm:$0xf]
    %v835 = vld [vmem:[#allocation13 + $0x1c] sm:$0xf]
    %v836 = vld [vmem:[%s12] sm:$0x1]
    %v838 = vlaneseq
    %v839 = vshrl.u32 %v838, 7
    %v840 = vsub.s32 0, %v839
    %v841 = vrot.slane %v836, %v840
    %v851 = vunpack.c.l.b16 %v828
    %v852 = vunpack.c.l.b16 %v829
    %v853 = vunpack.c.l.b16 %v830
    %v854 = vunpack.c.l.b16 %v831
    %v855 = vunpack.c.l.b16 %v832
    %v856 = vunpack.c.l.b16 %v833
    %v857 = vunpack.c.l.b16 %v834
    %v858 = vunpack.c.l.b16 %v835
    %v859 = vpack.c.b16 %v852, %v851
    %v860 = vpack.c.b16 %v854, %v853
    %v861 = vpack.c.b16 %v856, %v855
    %v862 = vpack.c.b16 %v858, %v857
    %v868 = vsel %vm698, %v827, 0
    %870 = vmatprep.subr.bf16.mxu0 0
    %871 = vmatpush1.bf16.msra.mxu0 0
    %872 = vmatprep.subr.bf16.mxu0 0
    %873 = vmatpush1.bf16.msra.mxu0 0
    %874 = vmatprep.subr.bf16.mxu0 0
    %875 = vmatpush1.bf16.msra.mxu0 0
    %876 = vmatprep.subr.bf16.mxu0 0
    %877 = vmatpush1.bf16.msra.mxu0 0
    %878 = vmatprep.subr.bf16.mxu0 0
    %879 = vmatpush1.bf16.msra.mxu0 %v862
    %880 = vmatprep.subr.bf16.mxu0 0
    %881 = vmatpush1.bf16.msra.mxu0 %v861
    %882 = vmatprep.subr.bf16.mxu0 0
    %883 = vmatpush1.bf16.msra.mxu0 %v860
    %884 = vmatprep.subr.bf16.mxu0 0
    %885 = vmatpush1.bf16.msra.mxu0 %v859
    %886 = vmatprep.subr.bf16.mxu0 0
    %887 = vmatpush2.bf16.msra.mxu0 0
    %888 = vmatprep.subr.bf16.mxu0 0
    %889 = vmatpush2.bf16.msra.mxu0 0
    %890 = vmatprep.subr.bf16.mxu0 0
    %891 = vmatpush2.bf16.msra.mxu0 0
    %892 = vmatprep.subr.bf16.mxu0 0
    %893 = vmatpush2.bf16.msra.mxu0 0
    %894 = vmatprep.subr.bf16.mxu0 0
    %895 = vmatpush2.bf16.msra.mxu0 0
    %896 = vmatprep.subr.bf16.mxu0 0
    %897 = vmatpush2.bf16.msra.mxu0 0
    %898 = vmatprep.subr.bf16.mxu0 0
    %899 = vmatpush2.bf16.msra.mxu0 0
    %900 = vmatprep.subr.bf16.mxu0 0
    %901 = vmatpush2.bf16.msra.mxu0 0
    %902 = vmatprep.mubr.bf16.mxu0 0
    %903 = vmatmul.mubr.bf16.gmra.mxu0 %v868
    %v904 = vpop.f32.mrf.mxu0
    %v905 = vadd.f32 %v841, %v904
    %v906 = vpop.f32.mrf.mxu0
    %v907 = vpop.f32.mrf.mxu0
    %v908 = vpop.f32.mrf.mxu0
    %909 = vdwg.mxu0
    %v910 = vtanh.pop %v905
    %v911 = vpack.c.bf16 %v910, %v910
    %v912 = vld [vmem:[#allocation14] sm:$0xf]
    %v913 = vld [vmem:[#allocation14 + $0x4] sm:$0xf]
    %v914 = vld [vmem:[#allocation14 + $0x8] sm:$0xf]
    %v915 = vld [vmem:[#allocation14 + $0xc] sm:$0xf]
    %v916 = vld [vmem:[#allocation14 + $0x10] sm:$0xf]
    %v917 = vld [vmem:[#allocation14 + $0x14] sm:$0xf]
    %v918 = vld [vmem:[#allocation14 + $0x18] sm:$0xf]
    %v919 = vld [vmem:[#allocation14 + $0x1c] sm:$0xf]
    %v920 = vld [vmem:[%s14] sm:$0x1]
    %v922 = vlaneseq
    %v923 = vshrl.u32 %v922, 7
    %v924 = vsub.s32 0, %v923
    %v925 = vrot.slane %v920, %v924
    %v935 = vunpack.c.l.b16 %v912
    %v936 = vunpack.c.l.b16 %v913
    %v937 = vunpack.c.l.b16 %v914
    %v938 = vunpack.c.l.b16 %v915
    %v939 = vunpack.c.l.b16 %v916
    %v940 = vunpack.c.l.b16 %v917
    %v941 = vunpack.c.l.b16 %v918
    %v942 = vunpack.c.l.b16 %v919
    %v943 = vpack.c.b16 %v936, %v935
    %v944 = vpack.c.b16 %v938, %v937
    %v945 = vpack.c.b16 %v940, %v939
    %v946 = vpack.c.b16 %v942, %v941
    %v952 = vsel %vm698, %v911, 0
    %954 = vmatprep.subr.bf16.mxu0 0
    %955 = vmatpush1.bf16.msra.mxu0 0
    %956 = vmatprep.subr.bf16.mxu0 0
    %957 = vmatpush1.bf16.msra.mxu0 0
    %958 = vmatprep.subr.bf16.mxu0 0
    %959 = vmatpush1.bf16.msra.mxu0 0
    %960 = vmatprep.subr.bf16.mxu0 0
    %961 = vmatpush1.bf16.msra.mxu0 0
    %962 = vmatprep.subr.bf16.mxu0 0
    %963 = vmatpush1.bf16.msra.mxu0 %v946
    %964 = vmatprep.subr.bf16.mxu0 0
    %965 = vmatpush1.bf16.msra.mxu0 %v945
    %966 = vmatprep.subr.bf16.mxu0 0
    %967 = vmatpush1.bf16.msra.mxu0 %v944
    %968 = vmatprep.subr.bf16.mxu0 0
    %969 = vmatpush1.bf16.msra.mxu0 %v943
    %970 = vmatprep.subr.bf16.mxu0 0
    %971 = vmatpush2.bf16.msra.mxu0 0
    %972 = vmatprep.subr.bf16.mxu0 0
    %973 = vmatpush2.bf16.msra.mxu0 0
    %974 = vmatprep.subr.bf16.mxu0 0
    %975 = vmatpush2.bf16.msra.mxu0 0
    %976 = vmatprep.subr.bf16.mxu0 0
    %977 = vmatpush2.bf16.msra.mxu0 0
    %978 = vmatprep.subr.bf16.mxu0 0
    %979 = vmatpush2.bf16.msra.mxu0 0
    %980 = vmatprep.subr.bf16.mxu0 0
    %981 = vmatpush2.bf16.msra.mxu0 0
    %982 = vmatprep.subr.bf16.mxu0 0
    %983 = vmatpush2.bf16.msra.mxu0 0
    %984 = vmatprep.subr.bf16.mxu0 0
    %985 = vmatpush2.bf16.msra.mxu0 0
    %986 = vmatprep.mubr.bf16.mxu0 0
    %987 = vmatmul.mubr.bf16.gmra.mxu0 %v952
    %v988 = vpop.f32.mrf.mxu0
    %v989 = vadd.f32 %v925, %v988
    %v990 = vpop.f32.mrf.mxu0
    %v991 = vpop.f32.mrf.mxu0
    %v992 = vpop.f32.mrf.mxu0
    %993 = vdwg.mxu0
    %v994 = vtanh.pop %v989
    %v995 = vadd.f32 %v994, %v653
    %v996 = vpack.c.bf16 %v995, %v995
    %v997 = vld [vmem:[#allocation16] sm:$0xff]
    %v998 = vld [vmem:[#allocation16 + $0x8] sm:$0xff]
    %v999 = vld [vmem:[#allocation16 + $0x10] sm:$0xff]
    %v1000 = vld [vmem:[#allocation16 + $0x18] sm:$0xff]
    %v1001 = vld [vmem:[#allocation16 + $0x20] sm:$0xff]
    %v1002 = vld [vmem:[#allocation16 + $0x28] sm:$0xff]
    %v1003 = vld [vmem:[#allocation16 + $0x30] sm:$0xff]
    %v1004 = vld [vmem:[#allocation16 + $0x38] sm:$0xff]
    %v1005 = vld [vmem:[%s16] sm:$0x3]
    %v1007 = vlaneseq
    %v1008 = vshrl.u32 %v1007, 7
    %v1009 = vsub.s32 0, %v1008
    %v1010 = vrot.slane %v1005, %v1009
    %v1011 = vlaneseq
    %v1012 = vshrl.u32 %v1011, 7
    %v1013 = vsub.s32 1, %v1012
    %v1014 = vrot.slane %v1005, %v1013
    %v1025 = vunpack.c.l.b16 %v997
    %v1026 = vunpack.c.h.b16 %v997
    %v1027 = vunpack.c.l.b16 %v998
    %v1028 = vunpack.c.h.b16 %v998
    %v1029 = vunpack.c.l.b16 %v999
    %v1030 = vunpack.c.h.b16 %v999
    %v1031 = vunpack.c.l.b16 %v1000
    %v1032 = vunpack.c.h.b16 %v1000
    %v1033 = vunpack.c.l.b16 %v1001
    %v1034 = vunpack.c.h.b16 %v1001
    %v1035 = vunpack.c.l.b16 %v1002
    %v1036 = vunpack.c.h.b16 %v1002
    %v1037 = vunpack.c.l.b16 %v1003
    %v1038 = vunpack.c.h.b16 %v1003
    %v1039 = vunpack.c.l.b16 %v1004
    %v1040 = vunpack.c.h.b16 %v1004
    %v1041 = vpack.c.b16 %v1027, %v1025
    %v1042 = vpack.c.b16 %v1028, %v1026
    %v1043 = vpack.c.b16 %v1031, %v1029
    %v1044 = vpack.c.b16 %v1032, %v1030
    %v1045 = vpack.c.b16 %v1035, %v1033
    %v1046 = vpack.c.b16 %v1036, %v1034
    %v1047 = vpack.c.b16 %v1039, %v1037
    %v1048 = vpack.c.b16 %v1040, %v1038
    %v1058 = vsel %vm698, %v996, 0
    %1060 = vmatprep.subr.bf16.mxu0 0
    %1061 = vmatpush1.bf16.msra.mxu0 0
    %1062 = vmatprep.subr.bf16.mxu0 0
    %1063 = vmatpush1.bf16.msra.mxu0 0
    %1064 = vmatprep.subr.bf16.mxu0 0
    %1065 = vmatpush1.bf16.msra.mxu0 0
    %1066 = vmatprep.subr.bf16.mxu0 0
    %1067 = vmatpush1.bf16.msra.mxu0 0
    %1068 = vmatprep.subr.bf16.mxu0 %v1048
    %1069 = vmatpush1.bf16.msra.mxu0 %v1047
    %1070 = vmatprep.subr.bf16.mxu0 %v1046
    %1071 = vmatpush1.bf16.msra.mxu0 %v1045
    %1072 = vmatprep.subr.bf16.mxu0 %v1044
    %1073 = vmatpush1.bf16.msra.mxu0 %v1043
    %1074 = vmatprep.subr.bf16.mxu0 %v1042
    %1075 = vmatpush1.bf16.msra.mxu0 %v1041
    %1076 = vmatprep.subr.bf16.mxu0 0
    %1077 = vmatpush2.bf16.msra.mxu0 0
    %1078 = vmatprep.subr.bf16.mxu0 0
    %1079 = vmatpush2.bf16.msra.mxu0 0
    %1080 = vmatprep.subr.bf16.mxu0 0
    %1081 = vmatpush2.bf16.msra.mxu0 0
    %1082 = vmatprep.subr.bf16.mxu0 0
    %1083 = vmatpush2.bf16.msra.mxu0 0
    %1084 = vmatprep.subr.bf16.mxu0 0
    %1085 = vmatpush2.bf16.msra.mxu0 0
    %1086 = vmatprep.subr.bf16.mxu0 0
    %1087 = vmatpush2.bf16.msra.mxu0 0
    %1088 = vmatprep.subr.bf16.mxu0 0
    %1089 = vmatpush2.bf16.msra.mxu0 0
    %1090 = vmatprep.subr.bf16.mxu0 0
    %1091 = vmatpush2.bf16.msra.mxu0 0
    %1092 = vmatprep.mubr.bf16.mxu0 0
    %1093 = vmatmul.mubr.bf16.gmra.mxu0 %v1058
    %v1094 = vpop.f32.mrf.mxu0
    %v1095 = vadd.f32 %v1010, %v1094
    %v1096 = vpop.f32.mrf.mxu0
    %v1097 = vadd.f32 %v1014, %v1096
    %v1098 = vpop.f32.mrf.mxu0
    %v1099 = vpop.f32.mrf.mxu0
    %1100 = vdwg.mxu0
    %v1101 = vmax.f32 %v1095, %v1097
    %1102 = vmax.xlane.f32.xlu0 %v1101
    %v1103 = vpop.xlane.xlu0 %1102
    %v1104 = vsub.f32 %v1095, %v1103
    %v1105 = vsub.f32 %v1097, %v1103
    %v1106 = vmul.f32 %v1104, 1.442695
    %v1107 = vpow.pop %v1106
    %v1108 = vmul.f32 %v1105, 1.442695
    %v1109 = vpow.pop %v1108
    %v1110 = vadd.f32 %v1107, %v1109
    %1111 = vadd.xlane.f32.xlu0 %v1110
    %v1112 = vpop.xlane.xlu0 %1111
    %v1113 = vrcp.pop %v1112
    %v1114 = vmul.f32 %v1107, %v1113
    %v1115 = vmul.f32 %v1109, %v1113
    %1117 = vrot.lane.b32.xlu0 %v995, 64
    %v1118 = vpop.permute.xlu0 %1117
    %v1120 = vsel %vm698, %v653, %v1118
    %1121 = vst [vmem:[#allocation17] sm:$0xff] %v1120
    %1122 = vst [vmem:[#allocation18] sm:$0xff] %v653
    %1123 = vst [vmem:[#allocation20] sm:$0xff] %v1114
    %1124 = vst [vmem:[#allocation20 + $0x8] sm:$0xff] %v1115
    // Predicated region
    $region106: #{tpu_custom_call.1} parent=1 // pred_check
      _
    $region107: #{tpu_custom_call.1} parent=1 // pred_check_branch
      %1126 = sbr.rel (0) target = $region109
    $region108: #{tpu_custom_call.1} parent=1 // pred_region
      %s1128 = ssub.s32 128, 128
      %1129 = vsyncadd [#allocation4], %s1128
      %s1131 = sshll.u32 [#allocation17], 4
      %s1132 = int_to_ptr.vmem [resolvable:$true] %s1131
      %1134 = dma.vmem_to_hbm [thread:$0]  %s1132, 128, %s17, [#allocation4]
    $region109: #{tpu_custom_call.1} parent=1 // pred_fallthru
      _
    // Predicated region
    $region110: #{tpu_custom_call.1} parent=1 // pred_check
      _
    $region111: #{tpu_custom_call.1} parent=1 // pred_check_branch
      %1136 = sbr.rel (0) target = $region113
    $region112: #{tpu_custom_call.1} parent=1 // pred_region
      %s1138 = ssub.s32 128, 128
      %1139 = vsyncadd [#allocation19], %s1138
      %s1141 = sshll.u32 [#allocation18], 4
      %s1142 = int_to_ptr.vmem [resolvable:$true] %s1141
      %1144 = dma.vmem_to_hbm [thread:$0]  %s1142, 128, %s18, [#allocation19]
    $region113: #{tpu_custom_call.1} parent=1 // pred_fallthru
      _
    // Predicated region
    $region114: #{tpu_custom_call.1} parent=1 // pred_check
      _
    $region115: #{tpu_custom_call.1} parent=1 // pred_check_branch
      %1146 = sbr.rel (0) target = $region117
    $region116: #{tpu_custom_call.1} parent=1 // pred_region
      %s1148 = ssub.s32 256, 256
      %1149 = vsyncadd [#allocation19], %s1148
      %s1151 = sshll.u32 [#allocation20], 4
      %s1152 = int_to_ptr.vmem [resolvable:$true] %s1151
      %1154 = dma.vmem_to_hbm [thread:$0]  %s1152, 256, %s19, [#allocation19]
    $region117: #{tpu_custom_call.1} parent=1 // pred_fallthru
      _
    // Predicated region
    $region118: #{tpu_custom_call.1} parent=1 // pred_check
      _
    $region119: #{tpu_custom_call.1} parent=1 // pred_check_branch
      %1156 = sbr.rel (0) target = $region121
    $region120: #{tpu_custom_call.1} parent=1 // pred_region
      %1157 = dma.done [#allocation4], 128
    $region121: #{tpu_custom_call.1} parent=1 // pred_fallthru
      _
    // Predicated region
    $region122: #{tpu_custom_call.1} parent=1 // pred_check
      _
    $region123: #{tpu_custom_call.1} parent=1 // pred_check_branch
      %1159 = sbr.rel (0) target = $region125
    $region124: #{tpu_custom_call.1} parent=1 // pred_region
      %1160 = dma.done [#allocation19], 128
    $region125: #{tpu_custom_call.1} parent=1 // pred_fallthru
      _
    // Predicated region
    $region126: #{tpu_custom_call.1} parent=1 // pred_check
      _
    $region127: #{tpu_custom_call.1} parent=1 // pred_check_branch
      %1162 = sbr.rel (0) target = $region129
    $region128: #{tpu_custom_call.1} parent=1 // pred_region
      %1163 = dma.done [#allocation19], 256
    $region129: #{tpu_custom_call.1} parent=1 // pred_fallthru
      _
    %1164 = vsyncpa [#allocation3], 1
    %1165 = vsyncpa [#allocation6], 1
    %1166 = vsyncpa [#allocation9], 1
    %1167 = vsyncpa [#allocation12], 1
    %1168 = vsyncpa [#allocation15], 1
    %1169 = vsyncpa [#allocation4], 1
    %1170 = vsyncpa [#allocation19], 1

</llo_original>
